<compile_context>
chip_gen: v7x
topology: tpu7x:2x2x1
jax: 0.10.0
libtpu: 0.0.40
codegen_flags: <defaults>
</compile_context>

<pallas_src>
import jax
import jax.numpy as jnp
from jax.experimental import pallas as pl
from jax.experimental.pallas import tpu as pltpu

PACK = 2  # batch elements packed side-by-side in lanes per grid step


# ---------------------------------------------------------------------------
# Fused REN + DCN kernel (one grid step = one PACK of batch elements)
# ---------------------------------------------------------------------------

def _make_red_kernel(H, WC2, WCH2):
    """Kernel for static dims: H rows, WC2 = PACK*W*C lanes, WCH2 = PACK*W*CH lanes."""

    def fill_lhs(lhs_ref, v, width):
        # Build the (H, 3*width) im2row LHS for a 3x3 conv whose width (dx) taps are
        # folded into the Toeplitz RHS.  dy-major blocks, lane offsets 0/width/2*width
        # are all multiples of 128, so every store is lane-aligned.
        #   block 0: v[r-1] (row 0 zero)   block 1: v[r]   block 2: v[r+1] (row H-1 zero)
        zero = jnp.zeros((1, width), jnp.float32)
        lhs_ref[0:1, 0:width] = zero
        lhs_ref[1:H, 0:width] = v[0:H - 1]
        lhs_ref[:, width:2 * width] = v
        lhs_ref[0:H - 1, 2 * width:3 * width] = v[1:H]
        lhs_ref[H - 1:H, 2 * width:3 * width] = zero

    def conv(lhs_ref, w_ref, b_ref):
        # Single MXU contraction per conv: K = 3*width (dy folded into K),
        # bf16 operands, f32 accumulation; bias broadcast over rows.
        lhs = lhs_ref[...].astype(jnp.bfloat16)
        acc = jax.lax.dot_general(lhs, w_ref[...],
                                  (((1,), (0,)), ((), ())),
                                  preferred_element_type=jnp.float32)
        return acc + b_ref[...]

    def kernel(coef_ref,                      # SMEM (2,) f32: [a_t - a_{t-1}, b_{t-1}]
               x_ref,                         # VMEM (1, H, WC2) f32
               wr1, br1, wr2, br2,            # REN fused weights / biases
               wd1, bd1, wd2, bd2,            # DCN fused weights / biases
               o_ref,                         # VMEM (1, H, WC2) f32
               lhs_x, lhs_h):                 # f32 scratches (H, 3*WC2) / (H, 3*WCH2)
        x = x_ref[0]                          # (H, WC2) f32 — full-precision skip term
        c1 = coef_ref[0]                      # alpha_t - alpha_{t-1}
        c2 = coef_ref[1]                      # beta_{t-1}

        # --- REN: x_hat = x - c1 * REN(x, t/max_T) ---
        fill_lhs(lhs_x, x, WC2)
        h = jnp.maximum(conv(lhs_x, wr1, br1), 0.0)
        fill_lhs(lhs_h, h, WCH2)
        x_hat = x - c1 * conv(lhs_h, wr2, br2)

        # --- DCN: out = x_hat - c2 * DCN(x_hat, (t-1)/max_T) ---
        fill_lhs(lhs_x, x_hat, WC2)
        h2 = jnp.maximum(conv(lhs_x, wd1, bd1), 0.0)
        fill_lhs(lhs_h, h2, WCH2)
        o_ref[0] = (x_hat - c2 * conv(lhs_h, wd2, bd2)).astype(o_ref.dtype)

    return kernel


# ---------------------------------------------------------------------------
# Wrapper-side layout helpers (tiny, done once per call)
# ---------------------------------------------------------------------------

def _toeplitz_weights(w, width):
    """(3,3,Cin,Cout) conv weights -> (3, width*Cin, width*Cout) width-Toeplitz slabs.

    wt[dy, s*Cin+ci, w*Cout+co] = w[dy, dx, ci, co] with s = w + dx - 1 (valid taps only),
    so 'same' zero padding along width is implicit.
    """
    kh, kw, cin, cout = w.shape
    src = jnp.arange(width)[:, None, None]
    dst = jnp.arange(width)[None, :, None]
    dx = jnp.arange(kw)[None, None, :]
    sel = (src == dst + dx - (kw // 2)).astype(w.dtype)       # (width, width, kw)
    wt = jnp.einsum('swx,yxio->ysiwo', sel, w)                # (kh, W, cin, W, cout)
    return wt.reshape(kh, width * cin, width * cout)


def _fused_weights(w, width, pack):
    """-> (3*pack*width*Cin, pack*width*Cout) bf16: width-Toeplitz (dx folded in),
    block-diagonal over `pack` lane-packed batch elements, dy taps stacked along K."""
    wt = _toeplitz_weights(w, width)                          # (3, W*Cin, W*Cout)
    kh, K, N = wt.shape
    eye = jnp.eye(pack, dtype=w.dtype)
    wt = jnp.einsum('pq,dkn->dpkqn', eye, wt).reshape(kh, pack * K, pack * N)
    return wt.reshape(kh * pack * K, pack * N).astype(jnp.bfloat16)


def time_embed(p, t_norm):
    """Tiny scalar-input MLP (glue, plain JAX)."""
    e = jnp.maximum(t_norm * p["tw1"] + p["tb1"], 0.0)        # (Ht,)
    return e @ p["tw2"] + p["tb2"]                            # (CH,)


def init_subnet_params(key, cin, ch, cout, ht):
    ks = jax.random.split(key, 4)
    return {
        "w1": 0.1 * jax.random.normal(ks[0], (3, 3, cin, ch), jnp.float32),
        "b1": jnp.zeros((ch,), jnp.float32),
        "w2": 0.1 * jax.random.normal(ks[1], (3, 3, ch, cout), jnp.float32),
        "b2": jnp.zeros((cout,), jnp.float32),
        "tw1": 0.5 * jax.random.normal(ks[2], (ht,), jnp.float32),
        "tb1": jnp.zeros((ht,), jnp.float32),
        "tw2": 0.1 * jax.random.normal(ks[3], (ht, ch), jnp.float32),
        "tb2": jnp.zeros((ch,), jnp.float32),
    }


# ---------------------------------------------------------------------------
# REDiffusion forward (equivalent of REDiffusion.forward(x_t, t), ratio=1)
# ---------------------------------------------------------------------------

def rediffusion_forward(p_ren, p_dcn, alphas, betas, max_T, x_nchw, t):
    B, C, H, W = x_nchw.shape
    CH = p_ren["w1"].shape[-1]

    # NCHW -> lane-dense (B, H, W*C), f32 (residual math stays full precision).
    x = jnp.transpose(x_nchw, (0, 2, 3, 1)).reshape(B, H, W * C).astype(jnp.float32)

    # Pack PACK batch elements side-by-side in lanes -> 128-lane loads/stores.
    Bp = -(-B // PACK) * PACK
    if Bp != B:
        x = jnp.concatenate([x, jnp.zeros((Bp - B, H, W * C), x.dtype)], axis=0)
    B2 = Bp // PACK
    x_pk = (x.reshape(B2, PACK, H, W * C)
             .transpose(0, 2, 1, 3)
             .reshape(B2, H, PACK * W * C))

    # RED coefficients. NOTE: like the PyTorch reference, t = 0 wraps to alphas[-1]/betas[-1].
    t_prev = t - 1
    coefs = jnp.stack([alphas[t] - alphas[t_prev], betas[t_prev]]).astype(jnp.float32)

    temb_r = time_embed(p_ren, t / max_T)
    temb_d = time_embed(p_dcn, t_prev / max_T)

    # Fused (dy-stacked, block-diagonal over the lane pack) bf16 MXU weights.
    wr1 = _fused_weights(p_ren["w1"], W, PACK)
    wr2 = _fused_weights(p_ren["w2"], W, PACK)
    wd1 = _fused_weights(p_dcn["w1"], W, PACK)
    wd2 = _fused_weights(p_dcn["w2"], W, PACK)
    br1 = jnp.tile(p_ren["b1"] + temb_r, PACK * W)[None, :].astype(jnp.float32)
    br2 = jnp.tile(p_ren["b2"], PACK * W)[None, :].astype(jnp.float32)
    bd1 = jnp.tile(p_dcn["b1"] + temb_d, PACK * W)[None, :].astype(jnp.float32)
    bd2 = jnp.tile(p_dcn["b2"], PACK * W)[None, :].astype(jnp.float32)

    WC2 = PACK * W * C        # 128 at demo size
    WCH2 = PACK * W * CH      # 256 at demo size
    kernel = _make_red_kernel(H, WC2, WCH2)

    out_pk = pl.pallas_call(
        kernel,
        out_shape=jax.ShapeDtypeStruct((B2, H, WC2), jnp.float32),
        grid=(B2,),
        in_specs=[
            pl.BlockSpec(memory_space=pltpu.MemorySpace.SMEM),        # coefs (2,)
            pl.BlockSpec((1, H, WC2), lambda b: (b, 0, 0)),           # x pair (f32)
            pl.BlockSpec((3 * WC2, WCH2), lambda b: (0, 0)),          # REN conv1 W
            pl.BlockSpec((1, WCH2), lambda b: (0, 0)),                # REN bias1+temb
            pl.BlockSpec((3 * WCH2, WC2), lambda b: (0, 0)),          # REN conv2 W
            pl.BlockSpec((1, WC2), lambda b: (0, 0)),                 # REN bias2
            pl.BlockSpec((3 * WC2, WCH2), lambda b: (0, 0)),          # DCN conv1 W
            pl.BlockSpec((1, WCH2), lambda b: (0, 0)),                # DCN bias1+temb
            pl.BlockSpec((3 * WCH2, WC2), lambda b: (0, 0)),          # DCN conv2 W
            pl.BlockSpec((1, WC2), lambda b: (0, 0)),                 # DCN bias2
        ],
        out_specs=pl.BlockSpec((1, H, WC2), lambda b: (b, 0, 0)),
        scratch_shapes=[
            pltpu.VMEM((H, 3 * WC2), jnp.float32),                    # im2row LHS (x / x_hat)
            pltpu.VMEM((H, 3 * WCH2), jnp.float32),                   # im2row LHS (h / h2)
        ],
        compiler_params=pltpu.CompilerParams(
            dimension_semantics=("parallel",),                        # shard pairs over TCs (v7x)
            vmem_limit_bytes=32 * 1024 * 1024,
        ),
    )(coefs, x_pk, wr1, br1, wr2, br2, wd1, bd1, wd2, bd2)

    # Unpack lanes -> batch, back to NCHW.
    out = (out_pk.reshape(B2, H, PACK, W * C)
                 .transpose(0, 2, 1, 3)
                 .reshape(Bp, H, W, C))[:B]
    return jnp.transpose(out, (0, 3, 1, 2))


# ---------------------------------------------------------------------------
# Main
# ---------------------------------------------------------------------------

if __name__ == "__main__":
    B, C, H, W = 2, 4, 16, 16
    CH, HT = 8, 8          # hidden conv channels, time-embedding hidden size
    MAX_T = 10
    T = 5                  # scalar time step (ratio = 1)

    key = jax.random.PRNGKey(0)
    k_x, k_ren, k_dcn = jax.random.split(key, 3)

    x_t = jax.random.normal(k_x, (B, C, H, W), jnp.float32)   # NCHW, like PyTorch
    p_ren = init_subnet_params(k_ren, C, CH, C, HT)
    p_dcn = init_subnet_params(k_dcn, C, CH, C, HT)

    alphas = jnp.linspace(0.0, 1.0, MAX_T + 1).astype(jnp.float32)
    betas = jnp.linspace(0.0, 1.0, MAX_T + 1).astype(jnp.float32)

    fwd = jax.jit(rediffusion_forward, static_argnums=(4,))
    out = fwd(p_ren, p_dcn, alphas, betas, MAX_T, x_t, T)
    out = jax.block_until_ready(out)

    assert out.shape == (B, C, H, W) and out.dtype == jnp.float32
    assert bool(jnp.all(jnp.isfinite(out)))
    print("KERNEL_OK")
</pallas_src>

<mosaic_0001>
module attributes {stable_mosaic.version = 11 : i64} {
  func.func @kernel(%arg0: i32, %arg1: memref<2xf32, #tpu.memory_space<smem>>, %arg2: memref<1x16x128xf32, #tpu.memory_space<vmem>>, %arg3: memref<384x256xbf16, #tpu.memory_space<vmem>>, %arg4: memref<1x256xf32, #tpu.memory_space<vmem>>, %arg5: memref<768x128xbf16, #tpu.memory_space<vmem>>, %arg6: memref<1x128xf32, #tpu.memory_space<vmem>>, %arg7: memref<384x256xbf16, #tpu.memory_space<vmem>>, %arg8: memref<1x256xf32, #tpu.memory_space<vmem>>, %arg9: memref<768x128xbf16, #tpu.memory_space<vmem>>, %arg10: memref<1x128xf32, #tpu.memory_space<vmem>>, %arg11: memref<1x16x128xf32, #tpu.memory_space<vmem>>, %arg12: memref<16x384xf32, #tpu.memory_space<vmem>>, %arg13: memref<16x768xf32, #tpu.memory_space<vmem>>) attributes {dimension_semantics = [#tpu.dimension_semantics<parallel>], iteration_bounds = array<i64: 1>, scalar_prefetch = 0 : i64, scratch_operands = 2 : i64, tpu.core_type = #tpu.core_type<tc>, window_params = [{transform_indices = @transform_0, window_bounds = array<i64: 2>}, {transform_indices = @transform_1, window_bounds = array<i64: 1, 16, 128>}, {pipeline_mode = #tpu.pipeline_mode<synchronous>, transform_indices = @transform_2, window_bounds = array<i64: 384, 256>}, {pipeline_mode = #tpu.pipeline_mode<synchronous>, transform_indices = @transform_3, window_bounds = array<i64: 1, 256>}, {pipeline_mode = #tpu.pipeline_mode<synchronous>, transform_indices = @transform_4, window_bounds = array<i64: 768, 128>}, {pipeline_mode = #tpu.pipeline_mode<synchronous>, transform_indices = @transform_5, window_bounds = array<i64: 1, 128>}, {pipeline_mode = #tpu.pipeline_mode<synchronous>, transform_indices = @transform_6, window_bounds = array<i64: 384, 256>}, {pipeline_mode = #tpu.pipeline_mode<synchronous>, transform_indices = @transform_7, window_bounds = array<i64: 1, 256>}, {pipeline_mode = #tpu.pipeline_mode<synchronous>, transform_indices = @transform_8, window_bounds = array<i64: 768, 128>}, {pipeline_mode = #tpu.pipeline_mode<synchronous>, transform_indices = @transform_9, window_bounds = array<i64: 1, 128>}, {transform_indices = @transform_10, window_bounds = array<i64: 1, 16, 128>}]} {
    %c0 = arith.constant 0 : index
    %c0_0 = arith.constant 0 : index
    %c0_1 = arith.constant 0 : index
    %0 = vector.load %arg2[%c0, %c0_0, %c0_1] : memref<1x16x128xf32, #tpu.memory_space<vmem>>, vector<1x16x128xf32>
    %1 = vector.shape_cast %0 : vector<1x16x128xf32> to vector<16x128xf32>
    %c0_2 = arith.constant 0 : index
    %2 = memref.load %arg1[%c0_2] : memref<2xf32, #tpu.memory_space<smem>>
    %c1 = arith.constant 1 : index
    %3 = memref.load %arg1[%c1] : memref<2xf32, #tpu.memory_space<smem>>
    %cst = arith.constant 0.000000e+00 : f32
    %4 = vector.broadcast %cst : f32 to vector<1x128xf32>
    %c0_3 = arith.constant 0 : index
    %c0_4 = arith.constant 0 : index
    %5 = vector.load %arg12[%c0_3, %c0_4] : memref<16x384xf32, #tpu.memory_space<vmem>>, vector<1x128xf32>
    tpu.vector_store %arg12[%c0_3, %c0_4], %4 {strides = array<i32>} : memref<16x384xf32, #tpu.memory_space<vmem>>, vector<1x128xf32>,
    %6 = vector.extract_strided_slice %1 {offsets = [0, 0], sizes = [15, 128], strides = [1, 1]} : vector<16x128xf32> to vector<15x128xf32>
    %c1_5 = arith.constant 1 : index
    %c0_6 = arith.constant 0 : index
    %7 = vector.load %arg12[%c1_5, %c0_6] : memref<16x384xf32, #tpu.memory_space<vmem>>, vector<15x128xf32>
    tpu.vector_store %arg12[%c1_5, %c0_6], %6 {strides = array<i32>} : memref<16x384xf32, #tpu.memory_space<vmem>>, vector<15x128xf32>,
    %c0_7 = arith.constant 0 : index
    %c128 = arith.constant 128 : index
    %8 = vector.load %arg12[%c0_7, %c128] : memref<16x384xf32, #tpu.memory_space<vmem>>, vector<16x128xf32>
    tpu.vector_store %arg12[%c0_7, %c128], %1 {strides = array<i32>} : memref<16x384xf32, #tpu.memory_space<vmem>>, vector<16x128xf32>,
    %9 = vector.extract_strided_slice %1 {offsets = [1, 0], sizes = [15, 128], strides = [1, 1]} : vector<16x128xf32> to vector<15x128xf32>
    %c0_8 = arith.constant 0 : index
    %c256 = arith.constant 256 : index
    %10 = vector.load %arg12[%c0_8, %c256] : memref<16x384xf32, #tpu.memory_space<vmem>>, vector<15x128xf32>
    tpu.vector_store %arg12[%c0_8, %c256], %9 {strides = array<i32>} : memref<16x384xf32, #tpu.memory_space<vmem>>, vector<15x128xf32>,
    %c15 = arith.constant 15 : index
    %c256_9 = arith.constant 256 : index
    %11 = vector.load %arg12[%c15, %c256_9] : memref<16x384xf32, #tpu.memory_space<vmem>>, vector<1x128xf32>
    tpu.vector_store %arg12[%c15, %c256_9], %4 {strides = array<i32>} : memref<16x384xf32, #tpu.memory_space<vmem>>, vector<1x128xf32>,
    %c0_10 = arith.constant 0 : index
    %c0_11 = arith.constant 0 : index
    %12 = vector.load %arg12[%c0_10, %c0_11] : memref<16x384xf32, #tpu.memory_space<vmem>>, vector<16x384xf32>
    %13 = arith.truncf %12 : vector<16x384xf32> to vector<16x384xbf16>
    %c0_12 = arith.constant 0 : index
    %c0_13 = arith.constant 0 : index
    %14 = vector.load %arg3[%c0_12, %c0_13] : memref<384x256xbf16, #tpu.memory_space<vmem>>, vector<384x256xbf16>
    %cst_14 = arith.constant dense<0.000000e+00> : vector<16x256xf32>
    %15 = tpu.matmul %13, %14, %cst_14 {dimension_numbers = #tpu.dot_dimension_numbers<[1], [0], [0], [1], [0, 0, 1, 1], [], []>} : vector<16x384xbf16>, vector<384x256xbf16>, vector<16x256xf32> -> vector<16x256xf32>
    %c0_15 = arith.constant 0 : index
    %c0_16 = arith.constant 0 : index
    %16 = vector.load %arg4[%c0_15, %c0_16] : memref<1x256xf32, #tpu.memory_space<vmem>>, vector<1x256xf32>
    %17 = vector.broadcast %16 : vector<1x256xf32> to vector<16x256xf32>
    %18 = arith.addf %15, %17 : vector<16x256xf32>
    %cst_17 = arith.constant 0.000000e+00 : f32
    %19 = vector.broadcast %cst_17 : f32 to vector<16x256xf32>
    %20 = arith.maximumf %18, %19 : vector<16x256xf32>
    %cst_18 = arith.constant 0.000000e+00 : f32
    %21 = vector.broadcast %cst_18 : f32 to vector<1x256xf32>
    %c0_19 = arith.constant 0 : index
    %c0_20 = arith.constant 0 : index
    %22 = vector.load %arg13[%c0_19, %c0_20] : memref<16x768xf32, #tpu.memory_space<vmem>>, vector<1x256xf32>
    tpu.vector_store %arg13[%c0_19, %c0_20], %21 {strides = array<i32>} : memref<16x768xf32, #tpu.memory_space<vmem>>, vector<1x256xf32>,
    %23 = vector.extract_strided_slice %20 {offsets = [0, 0], sizes = [15, 256], strides = [1, 1]} : vector<16x256xf32> to vector<15x256xf32>
    %c1_21 = arith.constant 1 : index
    %c0_22 = arith.constant 0 : index
    %24 = vector.load %arg13[%c1_21, %c0_22] : memref<16x768xf32, #tpu.memory_space<vmem>>, vector<15x256xf32>
    tpu.vector_store %arg13[%c1_21, %c0_22], %23 {strides = array<i32>} : memref<16x768xf32, #tpu.memory_space<vmem>>, vector<15x256xf32>,
    %c0_23 = arith.constant 0 : index
    %c256_24 = arith.constant 256 : index
    %25 = vector.load %arg13[%c0_23, %c256_24] : memref<16x768xf32, #tpu.memory_space<vmem>>, vector<16x256xf32>
    tpu.vector_store %arg13[%c0_23, %c256_24], %20 {strides = array<i32>} : memref<16x768xf32, #tpu.memory_space<vmem>>, vector<16x256xf32>,
    %26 = vector.extract_strided_slice %20 {offsets = [1, 0], sizes = [15, 256], strides = [1, 1]} : vector<16x256xf32> to vector<15x256xf32>
    %c0_25 = arith.constant 0 : index
    %c512 = arith.constant 512 : index
    %27 = vector.load %arg13[%c0_25, %c512] : memref<16x768xf32, #tpu.memory_space<vmem>>, vector<15x256xf32>
    tpu.vector_store %arg13[%c0_25, %c512], %26 {strides = array<i32>} : memref<16x768xf32, #tpu.memory_space<vmem>>, vector<15x256xf32>,
    %c15_26 = arith.constant 15 : index
    %c512_27 = arith.constant 512 : index
    %28 = vector.load %arg13[%c15_26, %c512_27] : memref<16x768xf32, #tpu.memory_space<vmem>>, vector<1x256xf32>
    tpu.vector_store %arg13[%c15_26, %c512_27], %21 {strides = array<i32>} : memref<16x768xf32, #tpu.memory_space<vmem>>, vector<1x256xf32>,
    %c0_28 = arith.constant 0 : index
    %c0_29 = arith.constant 0 : index
    %29 = vector.load %arg13[%c0_28, %c0_29] : memref<16x768xf32, #tpu.memory_space<vmem>>, vector<16x768xf32>
    %30 = arith.truncf %29 : vector<16x768xf32> to vector<16x768xbf16>
    %c0_30 = arith.constant 0 : index
    %c0_31 = arith.constant 0 : index
    %31 = vector.load %arg5[%c0_30, %c0_31] : memref<768x128xbf16, #tpu.memory_space<vmem>>, vector<768x128xbf16>
    %cst_32 = arith.constant dense<0.000000e+00> : vector<16x128xf32>
    %32 = tpu.matmul %30, %31, %cst_32 {dimension_numbers = #tpu.dot_dimension_numbers<[1], [0], [0], [1], [0, 0, 1, 1], [], []>} : vector<16x768xbf16>, vector<768x128xbf16>, vector<16x128xf32> -> vector<16x128xf32>
    %c0_33 = arith.constant 0 : index
    %c0_34 = arith.constant 0 : index
    %33 = vector.load %arg6[%c0_33, %c0_34] : memref<1x128xf32, #tpu.memory_space<vmem>>, vector<1x128xf32>
    %34 = vector.broadcast %33 : vector<1x128xf32> to vector<16x128xf32>
    %35 = arith.addf %32, %34 : vector<16x128xf32>
    %36 = vector.broadcast %2 : f32 to vector<16x128xf32>
    %37 = arith.mulf %36, %35 : vector<16x128xf32>
    %38 = arith.subf %1, %37 : vector<16x128xf32>
    %cst_35 = arith.constant 0.000000e+00 : f32
    %39 = vector.broadcast %cst_35 : f32 to vector<1x128xf32>
    %c0_36 = arith.constant 0 : index
    %c0_37 = arith.constant 0 : index
    %40 = vector.load %arg12[%c0_36, %c0_37] : memref<16x384xf32, #tpu.memory_space<vmem>>, vector<1x128xf32>
    tpu.vector_store %arg12[%c0_36, %c0_37], %39 {strides = array<i32>} : memref<16x384xf32, #tpu.memory_space<vmem>>, vector<1x128xf32>,
    %41 = vector.extract_strided_slice %38 {offsets = [0, 0], sizes = [15, 128], strides = [1, 1]} : vector<16x128xf32> to vector<15x128xf32>
    %c1_38 = arith.constant 1 : index
    %c0_39 = arith.constant 0 : index
    %42 = vector.load %arg12[%c1_38, %c0_39] : memref<16x384xf32, #tpu.memory_space<vmem>>, vector<15x128xf32>
    tpu.vector_store %arg12[%c1_38, %c0_39], %41 {strides = array<i32>} : memref<16x384xf32, #tpu.memory_space<vmem>>, vector<15x128xf32>,
    %c0_40 = arith.constant 0 : index
    %c128_41 = arith.constant 128 : index
    %43 = vector.load %arg12[%c0_40, %c128_41] : memref<16x384xf32, #tpu.memory_space<vmem>>, vector<16x128xf32>
    tpu.vector_store %arg12[%c0_40, %c128_41], %38 {strides = array<i32>} : memref<16x384xf32, #tpu.memory_space<vmem>>, vector<16x128xf32>,
    %44 = vector.extract_strided_slice %38 {offsets = [1, 0], sizes = [15, 128], strides = [1, 1]} : vector<16x128xf32> to vector<15x128xf32>
    %c0_42 = arith.constant 0 : index
    %c256_43 = arith.constant 256 : index
    %45 = vector.load %arg12[%c0_42, %c256_43] : memref<16x384xf32, #tpu.memory_space<vmem>>, vector<15x128xf32>
    tpu.vector_store %arg12[%c0_42, %c256_43], %44 {strides = array<i32>} : memref<16x384xf32, #tpu.memory_space<vmem>>, vector<15x128xf32>,
    %c15_44 = arith.constant 15 : index
    %c256_45 = arith.constant 256 : index
    %46 = vector.load %arg12[%c15_44, %c256_45] : memref<16x384xf32, #tpu.memory_space<vmem>>, vector<1x128xf32>
    tpu.vector_store %arg12[%c15_44, %c256_45], %39 {strides = array<i32>} : memref<16x384xf32, #tpu.memory_space<vmem>>, vector<1x128xf32>,
    %c0_46 = arith.constant 0 : index
    %c0_47 = arith.constant 0 : index
    %47 = vector.load %arg12[%c0_46, %c0_47] : memref<16x384xf32, #tpu.memory_space<vmem>>, vector<16x384xf32>
    %48 = arith.truncf %47 : vector<16x384xf32> to vector<16x384xbf16>
    %c0_48 = arith.constant 0 : index
    %c0_49 = arith.constant 0 : index
    %49 = vector.load %arg7[%c0_48, %c0_49] : memref<384x256xbf16, #tpu.memory_space<vmem>>, vector<384x256xbf16>
    %cst_50 = arith.constant dense<0.000000e+00> : vector<16x256xf32>
    %50 = tpu.matmul %48, %49, %cst_50 {dimension_numbers = #tpu.dot_dimension_numbers<[1], [0], [0], [1], [0, 0, 1, 1], [], []>} : vector<16x384xbf16>, vector<384x256xbf16>, vector<16x256xf32> -> vector<16x256xf32>
    %c0_51 = arith.constant 0 : index
    %c0_52 = arith.constant 0 : index
    %51 = vector.load %arg8[%c0_51, %c0_52] : memref<1x256xf32, #tpu.memory_space<vmem>>, vector<1x256xf32>
    %52 = vector.broadcast %51 : vector<1x256xf32> to vector<16x256xf32>
    %53 = arith.addf %50, %52 : vector<16x256xf32>
    %cst_53 = arith.constant 0.000000e+00 : f32
    %54 = vector.broadcast %cst_53 : f32 to vector<16x256xf32>
    %55 = arith.maximumf %53, %54 : vector<16x256xf32>
    %cst_54 = arith.constant 0.000000e+00 : f32
    %56 = vector.broadcast %cst_54 : f32 to vector<1x256xf32>
    %c0_55 = arith.constant 0 : index
    %c0_56 = arith.constant 0 : index
    %57 = vector.load %arg13[%c0_55, %c0_56] : memref<16x768xf32, #tpu.memory_space<vmem>>, vector<1x256xf32>
    tpu.vector_store %arg13[%c0_55, %c0_56], %56 {strides = array<i32>} : memref<16x768xf32, #tpu.memory_space<vmem>>, vector<1x256xf32>,
    %58 = vector.extract_strided_slice %55 {offsets = [0, 0], sizes = [15, 256], strides = [1, 1]} : vector<16x256xf32> to vector<15x256xf32>
    %c1_57 = arith.constant 1 : index
    %c0_58 = arith.constant 0 : index
    %59 = vector.load %arg13[%c1_57, %c0_58] : memref<16x768xf32, #tpu.memory_space<vmem>>, vector<15x256xf32>
    tpu.vector_store %arg13[%c1_57, %c0_58], %58 {strides = array<i32>} : memref<16x768xf32, #tpu.memory_space<vmem>>, vector<15x256xf32>,
    %c0_59 = arith.constant 0 : index
    %c256_60 = arith.constant 256 : index
    %60 = vector.load %arg13[%c0_59, %c256_60] : memref<16x768xf32, #tpu.memory_space<vmem>>, vector<16x256xf32>
    tpu.vector_store %arg13[%c0_59, %c256_60], %55 {strides = array<i32>} : memref<16x768xf32, #tpu.memory_space<vmem>>, vector<16x256xf32>,
    %61 = vector.extract_strided_slice %55 {offsets = [1, 0], sizes = [15, 256], strides = [1, 1]} : vector<16x256xf32> to vector<15x256xf32>
    %c0_61 = arith.constant 0 : index
    %c512_62 = arith.constant 512 : index
    %62 = vector.load %arg13[%c0_61, %c512_62] : memref<16x768xf32, #tpu.memory_space<vmem>>, vector<15x256xf32>
    tpu.vector_store %arg13[%c0_61, %c512_62], %61 {strides = array<i32>} : memref<16x768xf32, #tpu.memory_space<vmem>>, vector<15x256xf32>,
    %c15_63 = arith.constant 15 : index
    %c512_64 = arith.constant 512 : index
    %63 = vector.load %arg13[%c15_63, %c512_64] : memref<16x768xf32, #tpu.memory_space<vmem>>, vector<1x256xf32>
    tpu.vector_store %arg13[%c15_63, %c512_64], %56 {strides = array<i32>} : memref<16x768xf32, #tpu.memory_space<vmem>>, vector<1x256xf32>,
    %c0_65 = arith.constant 0 : index
    %c0_66 = arith.constant 0 : index
    %64 = vector.load %arg13[%c0_65, %c0_66] : memref<16x768xf32, #tpu.memory_space<vmem>>, vector<16x768xf32>
    %65 = arith.truncf %64 : vector<16x768xf32> to vector<16x768xbf16>
    %c0_67 = arith.constant 0 : index
    %c0_68 = arith.constant 0 : index
    %66 = vector.load %arg9[%c0_67, %c0_68] : memref<768x128xbf16, #tpu.memory_space<vmem>>, vector<768x128xbf16>
    %cst_69 = arith.constant dense<0.000000e+00> : vector<16x128xf32>
    %67 = tpu.matmul %65, %66, %cst_69 {dimension_numbers = #tpu.dot_dimension_numbers<[1], [0], [0], [1], [0, 0, 1, 1], [], []>} : vector<16x768xbf16>, vector<768x128xbf16>, vector<16x128xf32> -> vector<16x128xf32>
    %c0_70 = arith.constant 0 : index
    %c0_71 = arith.constant 0 : index
    %68 = vector.load %arg10[%c0_70, %c0_71] : memref<1x128xf32, #tpu.memory_space<vmem>>, vector<1x128xf32>
    %69 = vector.broadcast %68 : vector<1x128xf32> to vector<16x128xf32>
    %70 = arith.addf %67, %69 : vector<16x128xf32>
    %71 = vector.broadcast %3 : f32 to vector<16x128xf32>
    %72 = arith.mulf %71, %70 : vector<16x128xf32>
    %73 = arith.subf %38, %72 : vector<16x128xf32>
    %c0_72 = arith.constant 0 : index
    %c0_73 = arith.constant 0 : index
    %c0_74 = arith.constant 0 : index
    %74 = vector.load %arg11[%c0_72, %c0_73, %c0_74] : memref<1x16x128xf32, #tpu.memory_space<vmem>>, vector<1x16x128xf32>
    %75 = vector.shape_cast %74 : vector<1x16x128xf32> to vector<16x128xf32>
    %76 = vector.shape_cast %73 : vector<16x128xf32> to vector<1x16x128xf32>
    tpu.vector_store %arg11[%c0_72, %c0_73, %c0_74], %76 {strides = array<i32>} : memref<1x16x128xf32, #tpu.memory_space<vmem>>, vector<1x16x128xf32>,
    return
  }
  func.func @transform_0(%arg0: i32) -> i32 {
    %c0_i32 = arith.constant 0 : i32
    %c0_i32_0 = arith.constant 0 : i32
    return %c0_i32 : i32
  }
  func.func @transform_1(%arg0: i32) -> (i32, i32, i32) {
    %c0_i32 = arith.constant 0 : i32
    %c0_i32_0 = arith.constant 0 : i32
    %c0_i32_1 = arith.constant 0 : i32
    return %arg0, %c0_i32, %c0_i32_0 : i32, i32, i32
  }
  func.func @transform_2(%arg0: i32) -> (i32, i32) {
    %c0_i32 = arith.constant 0 : i32
    %c0_i32_0 = arith.constant 0 : i32
    %c0_i32_1 = arith.constant 0 : i32
    return %c0_i32, %c0_i32_0 : i32, i32
  }
  func.func @transform_3(%arg0: i32) -> (i32, i32) {
    %c0_i32 = arith.constant 0 : i32
    %c0_i32_0 = arith.constant 0 : i32
    %c0_i32_1 = arith.constant 0 : i32
    return %c0_i32, %c0_i32_0 : i32, i32
  }
  func.func @transform_4(%arg0: i32) -> (i32, i32) {
    %c0_i32 = arith.constant 0 : i32
    %c0_i32_0 = arith.constant 0 : i32
    %c0_i32_1 = arith.constant 0 : i32
    return %c0_i32, %c0_i32_0 : i32, i32
  }
  func.func @transform_5(%arg0: i32) -> (i32, i32) {
    %c0_i32 = arith.constant 0 : i32
    %c0_i32_0 = arith.constant 0 : i32
    %c0_i32_1 = arith.constant 0 : i32
    return %c0_i32, %c0_i32_0 : i32, i32
  }
  func.func @transform_6(%arg0: i32) -> (i32, i32) {
    %c0_i32 = arith.constant 0 : i32
    %c0_i32_0 = arith.constant 0 : i32
    %c0_i32_1 = arith.constant 0 : i32
    return %c0_i32, %c0_i32_0 : i32, i32
  }
  func.func @transform_7(%arg0: i32) -> (i32, i32) {
    %c0_i32 = arith.constant 0 : i32
    %c0_i32_0 = arith.constant 0 : i32
    %c0_i32_1 = arith.constant 0 : i32
    return %c0_i32, %c0_i32_0 : i32, i32
  }
  func.func @transform_8(%arg0: i32) -> (i32, i32) {
    %c0_i32 = arith.constant 0 : i32
    %c0_i32_0 = arith.constant 0 : i32
    %c0_i32_1 = arith.constant 0 : i32
    return %c0_i32, %c0_i32_0 : i32, i32
  }
  func.func @transform_9(%arg0: i32) -> (i32, i32) {
    %c0_i32 = arith.constant 0 : i32
    %c0_i32_0 = arith.constant 0 : i32
    %c0_i32_1 = arith.constant 0 : i32
    return %c0_i32, %c0_i32_0 : i32, i32
  }
  func.func @transform_10(%arg0: i32) -> (i32, i32, i32) {
    %c0_i32 = arith.constant 0 : i32
    %c0_i32_0 = arith.constant 0 : i32
    %c0_i32_1 = arith.constant 0 : i32
    return %arg0, %c0_i32, %c0_i32_0 : i32, i32, i32
  }
}

</mosaic_0001>

<llo_original>
// kernel: tile.33
$region0: #{tile.33}
  #allocation0 [shape = 's32[1]{0}', space=sflag, size = 0x4, scoped, tag = 'scoped memory for tile.33']
  %s0 = inlined_call_operand.vmem [shape: f32[8], index: 0, kind: input, shape index: {}]
  %s1 = inlined_call_operand.vmem [shape: f32[32,8], index: 1, kind: output, shape index: {}]
  // Predicated region
  $region2: #{tile.33} parent=0 // pred_check
    _
  $region3: #{tile.33} parent=0 // pred_check_branch
    %3 = sbr.rel (0) target = $region5
  $region4: #{tile.33} parent=0 // pred_region
    _
  $region5: #{tile.33} parent=0 // pred_fallthru
    _
  %v4 = vld [vmem:[%s0] ss:$0 sm:$0xff]
  %5 = vst [vmem:[%s1] sm:$0xff] %v4
  %s6 = scalar_lea.vmem %s1, 8
  %7 = vst [vmem:[%s6] sm:$0xff] %v4
  %s8 = scalar_lea.vmem %s1, 16
  %9 = vst [vmem:[%s8] sm:$0xff] %v4
  %s10 = scalar_lea.vmem %s1, 24
  %11 = vst [vmem:[%s10] sm:$0xff] %v4

// kernel: tile.34
$region0: #{tile.34}
  %s0 = inlined_call_operand.vmem [shape: f32[32,8], index: 0, kind: input, shape index: {}]
  %s1 = inlined_call_operand.vmem [shape: f32[1,256], index: 1, kind: output, shape index: {}]
  $region1: #{tile.34} parent=0
    #allocation0 [shape = 'u8[8192]{0}', space=vmem, size = 0x2000, scoped, tag = 'scoped mem for output reshape']
    %s2 = smov 3
    %v3 = vld [vmem:[%s0] ss:$16 sm:%s2]
    %vm4 = vcmask 64512
    %5 = vst.msk [vmem:[#allocation0] ss:$8 sm:$0x3] %vm4, %v3
    %s6 = scalar_lea.vmem %s0, 15
    %s7 = smov 3
    %v8 = vld [vmem:[%s6] ss:$16 sm:%s7]
    %9 = vrot.lane.b32.xlu0 %v8, 120
    %v10 = vpop.permute.xlu0 %9
    %vm11 = vcmask 1048512
    %12 = vst.msk [vmem:[#allocation0] ss:$8 sm:$0x3] %vm11, %v10
    %s13 = scalar_lea.vmem %s0, 14
    %s14 = smov 3
    %v15 = vld [vmem:[%s13] ss:$16 sm:%s14]
    %16 = vrot.lane.b32.xlu0 %v15, 112
    %v17 = vpop.permute.xlu0 %16
    %vm18 = vcmask 982912
    %19 = vst.msk [vmem:[#allocation0] ss:$8 sm:$0x3] %vm18, %v17
    %s20 = scalar_lea.vmem %s0, 13
    %s21 = smov 3
    %v22 = vld [vmem:[%s20] ss:$16 sm:%s21]
    %23 = vrot.lane.b32.xlu0 %v22, 104
    %v24 = vpop.permute.xlu0 %23
    %vm25 = vcmask 917312
    %26 = vst.msk [vmem:[#allocation0] ss:$8 sm:$0x3] %vm25, %v24
    %s27 = scalar_lea.vmem %s0, 12
    %s28 = smov 3
    %v29 = vld [vmem:[%s27] ss:$16 sm:%s28]
    %30 = vrot.lane.b32.xlu0 %v29, 96
    %v31 = vpop.permute.xlu0 %30
    %vm32 = vcmask 851712
    %33 = vst.msk [vmem:[#allocation0] ss:$8 sm:$0x3] %vm32, %v31
    %s34 = scalar_lea.vmem %s0, 11
    %s35 = smov 3
    %v36 = vld [vmem:[%s34] ss:$16 sm:%s35]
    %37 = vrot.lane.b32.xlu0 %v36, 88
    %v38 = vpop.permute.xlu0 %37
    %vm39 = vcmask 786112
    %40 = vst.msk [vmem:[#allocation0] ss:$8 sm:$0x3] %vm39, %v38
    %s41 = scalar_lea.vmem %s0, 10
    %s42 = smov 3
    %v43 = vld [vmem:[%s41] ss:$16 sm:%s42]
    %44 = vrot.lane.b32.xlu0 %v43, 80
    %v45 = vpop.permute.xlu0 %44
    %vm46 = vcmask 720512
    %47 = vst.msk [vmem:[#allocation0] ss:$8 sm:$0x3] %vm46, %v45
    %s48 = scalar_lea.vmem %s0, 9
    %s49 = smov 3
    %v50 = vld [vmem:[%s48] ss:$16 sm:%s49]
    %51 = vrot.lane.b32.xlu0 %v50, 72
    %v52 = vpop.permute.xlu0 %51
    %vm53 = vcmask 654912
    %54 = vst.msk [vmem:[#allocation0] ss:$8 sm:$0x3] %vm53, %v52
    %s55 = scalar_lea.vmem %s0, 8
    %s56 = smov 3
    %v57 = vld [vmem:[%s55] ss:$16 sm:%s56]
    %58 = vrot.lane.b32.xlu0 %v57, 64
    %v59 = vpop.permute.xlu0 %58
    %vm60 = vcmask 589312
    %61 = vst.msk [vmem:[#allocation0] ss:$8 sm:$0x3] %vm60, %v59
    %s62 = scalar_lea.vmem %s0, 7
    %s63 = smov 3
    %v64 = vld [vmem:[%s62] ss:$16 sm:%s63]
    %65 = vrot.lane.b32.xlu0 %v64, 56
    %v66 = vpop.permute.xlu0 %65
    %vm67 = vcmask 523712
    %68 = vst.msk [vmem:[#allocation0] ss:$8 sm:$0x3] %vm67, %v66
    %s69 = scalar_lea.vmem %s0, 6
    %s70 = smov 3
    %v71 = vld [vmem:[%s69] ss:$16 sm:%s70]
    %72 = vrot.lane.b32.xlu0 %v71, 48
    %v73 = vpop.permute.xlu0 %72
    %vm74 = vcmask 458112
    %75 = vst.msk [vmem:[#allocation0] ss:$8 sm:$0x3] %vm74, %v73
    %s76 = scalar_lea.vmem %s0, 5
    %s77 = smov 3
    %v78 = vld [vmem:[%s76] ss:$16 sm:%s77]
    %79 = vrot.lane.b32.xlu0 %v78, 40
    %v80 = vpop.permute.xlu0 %79
    %vm81 = vcmask 392512
    %82 = vst.msk [vmem:[#allocation0] ss:$8 sm:$0x3] %vm81, %v80
    %s83 = scalar_lea.vmem %s0, 4
    %s84 = smov 3
    %v85 = vld [vmem:[%s83] ss:$16 sm:%s84]
    %86 = vrot.lane.b32.xlu0 %v85, 32
    %v87 = vpop.permute.xlu0 %86
    %vm88 = vcmask 326912
    %89 = vst.msk [vmem:[#allocation0] ss:$8 sm:$0x3] %vm88, %v87
    %s90 = scalar_lea.vmem %s0, 3
    %s91 = smov 3
    %v92 = vld [vmem:[%s90] ss:$16 sm:%s91]
    %93 = vrot.lane.b32.xlu0 %v92, 24
    %v94 = vpop.permute.xlu0 %93
    %vm95 = vcmask 261312
    %96 = vst.msk [vmem:[#allocation0] ss:$8 sm:$0x3] %vm95, %v94
    %s97 = scalar_lea.vmem %s0, 2
    %s98 = smov 3
    %v99 = vld [vmem:[%s97] ss:$16 sm:%s98]
    %100 = vrot.lane.b32.xlu0 %v99, 16
    %v101 = vpop.permute.xlu0 %100
    %vm102 = vcmask 195712
    %103 = vst.msk [vmem:[#allocation0] ss:$8 sm:$0x3] %vm102, %v101
    %s104 = scalar_lea.vmem %s0, 1
    %s105 = smov 3
    %v106 = vld [vmem:[%s104] ss:$16 sm:%s105]
    %107 = vrot.lane.b32.xlu0 %v106, 8
    %v108 = vpop.permute.xlu0 %107
    %vm109 = vcmask 130112
    %110 = vst.msk [vmem:[#allocation0] ss:$8 sm:$0x3] %vm109, %v108
    %s112 = sshllo.u32 0, 1
    %v114 = vld [vmem:[#allocation0] sm:%s112]
    %s115 = sshllo.u32 0, 1
    %116 = vst [vmem:[%s1] sm:%s115] %v114
    %s117 = scalar_lea.vmem [#allocation0], 8
    %v118 = vld [vmem:[%s117] sm:%s112]
    %s119 = sshllo.u32 0, 1
    %s120 = scalar_lea.vmem %s1, 1
    %121 = vst [vmem:[%s120] sm:%s119] %v118

// kernel: tile.28
$region0: #{tile.28}
  #allocation0 [shape = 's32[1]{0}', space=sflag, size = 0x4, scoped, tag = 'scoped memory for tile.28']
  %s0 = inlined_call_operand.vmem [shape: f32[4], index: 0, kind: input, shape index: {}]
  %s1 = inlined_call_operand.vmem [shape: f32[32,4], index: 1, kind: output, shape index: {}]
  // Predicated region
  $region2: #{tile.28} parent=0 // pred_check
    _
  $region3: #{tile.28} parent=0 // pred_check_branch
    %3 = sbr.rel (0) target = $region5
  $region4: #{tile.28} parent=0 // pred_region
    _
  $region5: #{tile.28} parent=0 // pred_fallthru
    _
  %v4 = vld [vmem:[%s0] ss:$0 sm:$0xff]
  %5 = vst [vmem:[%s1] sm:$0xff] %v4
  %s6 = scalar_lea.vmem %s1, 8
  %7 = vst [vmem:[%s6] sm:$0xff] %v4
  %s8 = scalar_lea.vmem %s1, 16
  %9 = vst [vmem:[%s8] sm:$0xff] %v4
  %s10 = scalar_lea.vmem %s1, 24
  %11 = vst [vmem:[%s10] sm:$0xff] %v4

// kernel: tile.29
$region0: #{tile.29}
  %s0 = inlined_call_operand.vmem [shape: f32[32,4], index: 0, kind: input, shape index: {}]
  %s1 = inlined_call_operand.vmem [shape: f32[1,128], index: 1, kind: output, shape index: {}]
  $region1: #{tile.29} parent=0
    #allocation0 [shape = 'u8[4096]{0}', space=vmem, size = 0x1000, scoped, tag = 'scoped mem for output reshape']
    %v2 = vld [vmem:[%s0] sm:$0x1]
    %vm3 = vcmask 31744
    %4 = vst.msk [vmem:[#allocation0] sm:$0x1] %vm3, %v2
    %s5 = scalar_lea.vmem %s0, 31
    %v6 = vld [vmem:[%s5] sm:$0x1]
    %7 = vrot.lane.b32.xlu0 %v6, 124
    %v8 = vpop.permute.xlu0 %7
    %vm9 = vcmask 1048544
    %10 = vst.msk [vmem:[#allocation0] sm:$0x1] %vm9, %v8
    %s11 = scalar_lea.vmem %s0, 30
    %v12 = vld [vmem:[%s11] sm:$0x1]
    %13 = vrot.lane.b32.xlu0 %v12, 120
    %v14 = vpop.permute.xlu0 %13
    %vm15 = vcmask 1015744
    %16 = vst.msk [vmem:[#allocation0] sm:$0x1] %vm15, %v14
    %s17 = scalar_lea.vmem %s0, 29
    %v18 = vld [vmem:[%s17] sm:$0x1]
    %19 = vrot.lane.b32.xlu0 %v18, 116
    %v20 = vpop.permute.xlu0 %19
    %vm21 = vcmask 982944
    %22 = vst.msk [vmem:[#allocation0] sm:$0x1] %vm21, %v20
    %s23 = scalar_lea.vmem %s0, 28
    %v24 = vld [vmem:[%s23] sm:$0x1]
    %25 = vrot.lane.b32.xlu0 %v24, 112
    %v26 = vpop.permute.xlu0 %25
    %vm27 = vcmask 950144
    %28 = vst.msk [vmem:[#allocation0] sm:$0x1] %vm27, %v26
    %s29 = scalar_lea.vmem %s0, 27
    %v30 = vld [vmem:[%s29] sm:$0x1]
    %31 = vrot.lane.b32.xlu0 %v30, 108
    %v32 = vpop.permute.xlu0 %31
    %vm33 = vcmask 917344
    %34 = vst.msk [vmem:[#allocation0] sm:$0x1] %vm33, %v32
    %s35 = scalar_lea.vmem %s0, 26
    %v36 = vld [vmem:[%s35] sm:$0x1]
    %37 = vrot.lane.b32.xlu0 %v36, 104
    %v38 = vpop.permute.xlu0 %37
    %vm39 = vcmask 884544
    %40 = vst.msk [vmem:[#allocation0] sm:$0x1] %vm39, %v38
    %s41 = scalar_lea.vmem %s0, 25
    %v42 = vld [vmem:[%s41] sm:$0x1]
    %43 = vrot.lane.b32.xlu0 %v42, 100
    %v44 = vpop.permute.xlu0 %43
    %vm45 = vcmask 851744
    %46 = vst.msk [vmem:[#allocation0] sm:$0x1] %vm45, %v44
    %s47 = scalar_lea.vmem %s0, 24
    %v48 = vld [vmem:[%s47] sm:$0x1]
    %49 = vrot.lane.b32.xlu0 %v48, 96
    %v50 = vpop.permute.xlu0 %49
    %vm51 = vcmask 818944
    %52 = vst.msk [vmem:[#allocation0] sm:$0x1] %vm51, %v50
    %s53 = scalar_lea.vmem %s0, 23
    %v54 = vld [vmem:[%s53] sm:$0x1]
    %55 = vrot.lane.b32.xlu0 %v54, 92
    %v56 = vpop.permute.xlu0 %55
    %vm57 = vcmask 786144
    %58 = vst.msk [vmem:[#allocation0] sm:$0x1] %vm57, %v56
    %s59 = scalar_lea.vmem %s0, 22
    %v60 = vld [vmem:[%s59] sm:$0x1]
    %61 = vrot.lane.b32.xlu0 %v60, 88
    %v62 = vpop.permute.xlu0 %61
    %vm63 = vcmask 753344
    %64 = vst.msk [vmem:[#allocation0] sm:$0x1] %vm63, %v62
    %s65 = scalar_lea.vmem %s0, 21
    %v66 = vld [vmem:[%s65] sm:$0x1]
    %67 = vrot.lane.b32.xlu0 %v66, 84
    %v68 = vpop.permute.xlu0 %67
    %vm69 = vcmask 720544
    %70 = vst.msk [vmem:[#allocation0] sm:$0x1] %vm69, %v68
    %s71 = scalar_lea.vmem %s0, 20
    %v72 = vld [vmem:[%s71] sm:$0x1]
    %73 = vrot.lane.b32.xlu0 %v72, 80
    %v74 = vpop.permute.xlu0 %73
    %vm75 = vcmask 687744
    %76 = vst.msk [vmem:[#allocation0] sm:$0x1] %vm75, %v74
    %s77 = scalar_lea.vmem %s0, 19
    %v78 = vld [vmem:[%s77] sm:$0x1]
    %79 = vrot.lane.b32.xlu0 %v78, 76
    %v80 = vpop.permute.xlu0 %79
    %vm81 = vcmask 654944
    %82 = vst.msk [vmem:[#allocation0] sm:$0x1] %vm81, %v80
    %s83 = scalar_lea.vmem %s0, 18
    %v84 = vld [vmem:[%s83] sm:$0x1]
    %85 = vrot.lane.b32.xlu0 %v84, 72
    %v86 = vpop.permute.xlu0 %85
    %vm87 = vcmask 622144
    %88 = vst.msk [vmem:[#allocation0] sm:$0x1] %vm87, %v86
    %s89 = scalar_lea.vmem %s0, 17
    %v90 = vld [vmem:[%s89] sm:$0x1]
    %91 = vrot.lane.b32.xlu0 %v90, 68
    %v92 = vpop.permute.xlu0 %91
    %vm93 = vcmask 589344
    %94 = vst.msk [vmem:[#allocation0] sm:$0x1] %vm93, %v92
    %s95 = scalar_lea.vmem %s0, 16
    %v96 = vld [vmem:[%s95] sm:$0x1]
    %97 = vrot.lane.b32.xlu0 %v96, 64
    %v98 = vpop.permute.xlu0 %97
    %vm99 = vcmask 556544
    %100 = vst.msk [vmem:[#allocation0] sm:$0x1] %vm99, %v98
    %s101 = scalar_lea.vmem %s0, 15
    %v102 = vld [vmem:[%s101] sm:$0x1]
    %103 = vrot.lane.b32.xlu0 %v102, 60
    %v104 = vpop.permute.xlu0 %103
    %vm105 = vcmask 523744
    %106 = vst.msk [vmem:[#allocation0] sm:$0x1] %vm105, %v104
    %s107 = scalar_lea.vmem %s0, 14
    %v108 = vld [vmem:[%s107] sm:$0x1]
    %109 = vrot.lane.b32.xlu0 %v108, 56
    %v110 = vpop.permute.xlu0 %109
    %vm111 = vcmask 490944
    %112 = vst.msk [vmem:[#allocation0] sm:$0x1] %vm111, %v110
    %s113 = scalar_lea.vmem %s0, 13
    %v114 = vld [vmem:[%s113] sm:$0x1]
    %115 = vrot.lane.b32.xlu0 %v114, 52
    %v116 = vpop.permute.xlu0 %115
    %vm117 = vcmask 458144
    %118 = vst.msk [vmem:[#allocation0] sm:$0x1] %vm117, %v116
    %s119 = scalar_lea.vmem %s0, 12
    %v120 = vld [vmem:[%s119] sm:$0x1]
    %121 = vrot.lane.b32.xlu0 %v120, 48
    %v122 = vpop.permute.xlu0 %121
    %vm123 = vcmask 425344
    %124 = vst.msk [vmem:[#allocation0] sm:$0x1] %vm123, %v122
    %s125 = scalar_lea.vmem %s0, 11
    %v126 = vld [vmem:[%s125] sm:$0x1]
    %127 = vrot.lane.b32.xlu0 %v126, 44
    %v128 = vpop.permute.xlu0 %127
    %vm129 = vcmask 392544
    %130 = vst.msk [vmem:[#allocation0] sm:$0x1] %vm129, %v128
    %s131 = scalar_lea.vmem %s0, 10
    %v132 = vld [vmem:[%s131] sm:$0x1]
    %133 = vrot.lane.b32.xlu0 %v132, 40
    %v134 = vpop.permute.xlu0 %133
    %vm135 = vcmask 359744
    %136 = vst.msk [vmem:[#allocation0] sm:$0x1] %vm135, %v134
    %s137 = scalar_lea.vmem %s0, 9
    %v138 = vld [vmem:[%s137] sm:$0x1]
    %139 = vrot.lane.b32.xlu0 %v138, 36
    %v140 = vpop.permute.xlu0 %139
    %vm141 = vcmask 326944
    %142 = vst.msk [vmem:[#allocation0] sm:$0x1] %vm141, %v140
    %s143 = scalar_lea.vmem %s0, 8
    %v144 = vld [vmem:[%s143] sm:$0x1]
    %145 = vrot.lane.b32.xlu0 %v144, 32
    %v146 = vpop.permute.xlu0 %145
    %vm147 = vcmask 294144
    %148 = vst.msk [vmem:[#allocation0] sm:$0x1] %vm147, %v146
    %s149 = scalar_lea.vmem %s0, 7
    %v150 = vld [vmem:[%s149] sm:$0x1]
    %151 = vrot.lane.b32.xlu0 %v150, 28
    %v152 = vpop.permute.xlu0 %151
    %vm153 = vcmask 261344
    %154 = vst.msk [vmem:[#allocation0] sm:$0x1] %vm153, %v152
    %s155 = scalar_lea.vmem %s0, 6
    %v156 = vld [vmem:[%s155] sm:$0x1]
    %157 = vrot.lane.b32.xlu0 %v156, 24
    %v158 = vpop.permute.xlu0 %157
    %vm159 = vcmask 228544
    %160 = vst.msk [vmem:[#allocation0] sm:$0x1] %vm159, %v158
    %s161 = scalar_lea.vmem %s0, 5
    %v162 = vld [vmem:[%s161] sm:$0x1]
    %163 = vrot.lane.b32.xlu0 %v162, 20
    %v164 = vpop.permute.xlu0 %163
    %vm165 = vcmask 195744
    %166 = vst.msk [vmem:[#allocation0] sm:$0x1] %vm165, %v164
    %s167 = scalar_lea.vmem %s0, 4
    %v168 = vld [vmem:[%s167] sm:$0x1]
    %169 = vrot.lane.b32.xlu0 %v168, 16
    %v170 = vpop.permute.xlu0 %169
    %vm171 = vcmask 162944
    %172 = vst.msk [vmem:[#allocation0] sm:$0x1] %vm171, %v170
    %s173 = scalar_lea.vmem %s0, 3
    %v174 = vld [vmem:[%s173] sm:$0x1]
    %175 = vrot.lane.b32.xlu0 %v174, 12
    %v176 = vpop.permute.xlu0 %175
    %vm177 = vcmask 130144
    %178 = vst.msk [vmem:[#allocation0] sm:$0x1] %vm177, %v176
    %s179 = scalar_lea.vmem %s0, 2
    %v180 = vld [vmem:[%s179] sm:$0x1]
    %181 = vrot.lane.b32.xlu0 %v180, 8
    %v182 = vpop.permute.xlu0 %181
    %vm183 = vcmask 97344
    %184 = vst.msk [vmem:[#allocation0] sm:$0x1] %vm183, %v182
    %s185 = scalar_lea.vmem %s0, 1
    %v186 = vld [vmem:[%s185] sm:$0x1]
    %187 = vrot.lane.b32.xlu0 %v186, 4
    %v188 = vpop.permute.xlu0 %187
    %vm189 = vcmask 64544
    %190 = vst.msk [vmem:[#allocation0] sm:$0x1] %vm189, %v188
    %s192 = sshllo.u32 0, 1
    %v194 = vld [vmem:[#allocation0] sm:%s192]
    %s195 = sshllo.u32 0, 1
    %196 = vst [vmem:[%s1] sm:%s195] %v194

// kernel: rediffusion_forward.1
$region0: #{rediffusion_forward.1}
  #allocation0 [shape = 'u32[]', space=smem, size = 0x4, offset = 0x4, fixed_abs, tag = 'smem constant byte address 0x4 - core index']
  #allocation1 [shape = 'u32[144,128]{1,0:T(1,128)}', space=vmem, size = 0x12000, scoped, tag = 'internal scratch']
  #allocation2 [shape = 'f32[16,384]{1,0:T(8,128)}', space=vmem, size = 0x6000, scoped, tag = 'scratch operand']
  #allocation3 [shape = 'f32[16,768]{1,0:T(8,128)}', space=vmem, size = 0xc000, scoped, tag = 'scratch operand']
  %s0 = inlined_call_operand.vmem [shape: f32[2], index: 0, kind: input, shape index: {}]
  %s1 = inlined_call_operand.vmem [shape: f32[1,16,128], index: 1, kind: input, shape index: {}]
  %s2 = inlined_call_operand.vmem [shape: bf16[384,256], index: 2, kind: input, shape index: {}]
  %s3 = inlined_call_operand.vmem [shape: f32[1,256], index: 3, kind: input, shape index: {}]
  %s4 = inlined_call_operand.vmem [shape: bf16[768,128], index: 4, kind: input, shape index: {}]
  %s5 = inlined_call_operand.vmem [shape: f32[1,128], index: 5, kind: input, shape index: {}]
  %s6 = inlined_call_operand.vmem [shape: bf16[384,256], index: 6, kind: input, shape index: {}]
  %s7 = inlined_call_operand.vmem [shape: f32[1,256], index: 7, kind: input, shape index: {}]
  %s8 = inlined_call_operand.vmem [shape: bf16[768,128], index: 8, kind: input, shape index: {}]
  %s9 = inlined_call_operand.vmem [shape: f32[1,128], index: 9, kind: input, shape index: {}]
  %s10 = inlined_call_operand.vmem [shape: f32[1,16,128], index: 10, kind: output, shape index: {}]
  %s11 = sld [smem:[#allocation0]]
  $region54: #{rediffusion_forward.1} parent=0
    _
  %s13 = ssub.s32 1, %s11
  %s14 = scalar_select 0, %s13, %s11
  $region1: #{rediffusion_forward.1} parent=0
    #allocation4 [shape = 'u8[512]{0}', space=smem, size = 0x200, scoped, tag = 'input window, operand 0, single buffered']
    #allocation5 [shape = 's32[1]{0}', space=sflag, size = 0x4, scoped, tag = 'scoped memory for rediffusion_forward.1']
    %15 = vsyncpa [#allocation5], 0
    // Predicated region
    $region2: #{rediffusion_forward.1} parent=1 // pred_check
      _
    $region3: #{rediffusion_forward.1} parent=1 // pred_check_branch
      %17 = sbr.rel (0) target = $region5
    $region4: #{rediffusion_forward.1} parent=1 // pred_region
      %s19 = ssub.s32 16, 16
      %20 = vsyncadd [#allocation5], %s19
      %s22 = sshll.u32 %s0, 4
      %s23 = int_to_ptr.vmem [resolvable:$true] %s22
      %25 = dma.vmem_to_smem %s23, 16, [#allocation4], [#allocation5]
    $region5: #{rediffusion_forward.1} parent=1 // pred_fallthru
      _
    // Predicated region
    $region6: #{rediffusion_forward.1} parent=1 // pred_check
      _
    $region7: #{rediffusion_forward.1} parent=1 // pred_check_branch
      %27 = sbr.rel (0) target = $region9
    $region8: #{rediffusion_forward.1} parent=1 // pred_region
      _
    $region9: #{rediffusion_forward.1} parent=1 // pred_fallthru
      _
    // Predicated region
    $region10: #{rediffusion_forward.1} parent=1 // pred_check
      _
    $region11: #{rediffusion_forward.1} parent=1 // pred_check_branch
      %29 = sbr.rel (0) target = $region13
    $region12: #{rediffusion_forward.1} parent=1 // pred_region
      _
    $region13: #{rediffusion_forward.1} parent=1 // pred_fallthru
      _
    // Predicated region
    $region14: #{rediffusion_forward.1} parent=1 // pred_check
      _
    $region15: #{rediffusion_forward.1} parent=1 // pred_check_branch
      %31 = sbr.rel (0) target = $region17
    $region16: #{rediffusion_forward.1} parent=1 // pred_region
      _
    $region17: #{rediffusion_forward.1} parent=1 // pred_fallthru
      _
    // Predicated region
    $region18: #{rediffusion_forward.1} parent=1 // pred_check
      _
    $region19: #{rediffusion_forward.1} parent=1 // pred_check_branch
      %33 = sbr.rel (0) target = $region21
    $region20: #{rediffusion_forward.1} parent=1 // pred_region
      _
    $region21: #{rediffusion_forward.1} parent=1 // pred_fallthru
      _
    // Predicated region
    $region22: #{rediffusion_forward.1} parent=1 // pred_check
      _
    $region23: #{rediffusion_forward.1} parent=1 // pred_check_branch
      %35 = sbr.rel (0) target = $region25
    $region24: #{rediffusion_forward.1} parent=1 // pred_region
      _
    $region25: #{rediffusion_forward.1} parent=1 // pred_fallthru
      _
    // Predicated region
    $region26: #{rediffusion_forward.1} parent=1 // pred_check
      _
    $region27: #{rediffusion_forward.1} parent=1 // pred_check_branch
      %37 = sbr.rel (0) target = $region29
    $region28: #{rediffusion_forward.1} parent=1 // pred_region
      _
    $region29: #{rediffusion_forward.1} parent=1 // pred_fallthru
      _
    // Predicated region
    $region30: #{rediffusion_forward.1} parent=1 // pred_check
      _
    $region31: #{rediffusion_forward.1} parent=1 // pred_check_branch
      %39 = sbr.rel (0) target = $region33
    $region32: #{rediffusion_forward.1} parent=1 // pred_region
      _
    $region33: #{rediffusion_forward.1} parent=1 // pred_fallthru
      _
    // Predicated region
    $region34: #{rediffusion_forward.1} parent=1 // pred_check
      _
    $region35: #{rediffusion_forward.1} parent=1 // pred_check_branch
      %41 = sbr.rel (0) target = $region37
    $region36: #{rediffusion_forward.1} parent=1 // pred_region
      _
    $region37: #{rediffusion_forward.1} parent=1 // pred_fallthru
      _
    // Predicated region
    $region38: #{rediffusion_forward.1} parent=1 // pred_check
      _
    $region39: #{rediffusion_forward.1} parent=1 // pred_check_branch
      %43 = sbr.rel (0) target = $region41
    $region40: #{rediffusion_forward.1} parent=1 // pred_region
      _
    $region41: #{rediffusion_forward.1} parent=1 // pred_fallthru
      _
    // Predicated region
    $region42: #{rediffusion_forward.1} parent=1 // pred_check
      _
    $region43: #{rediffusion_forward.1} parent=1 // pred_check_branch
      %45 = sbr.rel (0) target = $region45
    $region44: #{rediffusion_forward.1} parent=1 // pred_region
      %46 = dma.done [#allocation5], 16
    $region45: #{rediffusion_forward.1} parent=1 // pred_fallthru
      _
    %47 = sfence
    %v49 = vld [vmem:[%s1] sm:$0xff]
    %v50 = vld [vmem:[%s1 + $0x8] sm:$0xff]
    %s51 = sld [smem:[#allocation4]]
    %s52 = sld [smem:[#allocation4 + $0x1]]
    %53 = vst [vmem:[#allocation2] sm:$0x1] 0.0
    %vm56 = vcmask 1040384
    %v57 = vrot.slane %v49, 7
    %v58 = vrot.slane %v50, 7
    %v59 = vsel %vm56, %v57, %v58
    %62 = vst [vmem:[#allocation2] sm:$0xfe] %v57
    %63 = vst [vmem:[#allocation2 + $0x18] sm:$0xff] %v59
    %64 = vst [vmem:[#allocation2 + $0x8] sm:$0xff] %v49
    %65 = vst [vmem:[#allocation2 + $0x20] sm:$0xff] %v50
    %vm66 = vcmask 1046528
    %v67 = vrot.slane %v49, 1
    %v68 = vrot.slane %v50, 1
    %v69 = vsel %vm66, %v67, %v68
    %72 = vst [vmem:[#allocation2 + $0x10] sm:$0xff] %v69
    %73 = vst [vmem:[#allocation2 + $0x28] sm:$0x7f] %v68
    %74 = vst [vmem:[#allocation2 + $0x2f] sm:$0x1] 0.0
    %v75 = vld [vmem:[#allocation2] sm:$0xff]
    %v76 = vld [vmem:[#allocation2 + $0x8] sm:$0xff]
    %v77 = vld [vmem:[#allocation2 + $0x10] sm:$0xff]
    %v78 = vld [vmem:[#allocation2 + $0x18] sm:$0xff]
    %v79 = vld [vmem:[#allocation2 + $0x20] sm:$0xff]
    %v80 = vld [vmem:[#allocation2 + $0x28] sm:$0xff]
    %v81 = vpack.c.bf16 %v78, %v75
    %v82 = vpack.c.bf16 %v79, %v76
    %v83 = vpack.c.bf16 %v80, %v77
    %v84 = vld [vmem:[%s2] sm:$0xff]
    %v85 = vld [vmem:[%s2 + $0x8] sm:$0xff]
    %v86 = vld [vmem:[%s2 + $0x10] sm:$0xff]
    %v87 = vld [vmem:[%s2 + $0x18] sm:$0xff]
    %v88 = vld [vmem:[%s2 + $0x20] sm:$0xff]
    %v89 = vld [vmem:[%s2 + $0x28] sm:$0xff]
    %v90 = vld [vmem:[%s2 + $0x30] sm:$0xff]
    %v91 = vld [vmem:[%s2 + $0x38] sm:$0xff]
    %v92 = vld [vmem:[%s2 + $0x40] sm:$0xff]
    %v93 = vld [vmem:[%s2 + $0x48] sm:$0xff]
    %v94 = vld [vmem:[%s2 + $0x50] sm:$0xff]
    %v95 = vld [vmem:[%s2 + $0x58] sm:$0xff]
    %v96 = vld [vmem:[%s2 + $0x60] sm:$0xff]
    %v97 = vld [vmem:[%s2 + $0x68] sm:$0xff]
    %v98 = vld [vmem:[%s2 + $0x70] sm:$0xff]
    %v99 = vld [vmem:[%s2 + $0x78] sm:$0xff]
    %v100 = vld [vmem:[%s2 + $0x80] sm:$0xff]
    %v101 = vld [vmem:[%s2 + $0x88] sm:$0xff]
    %v102 = vld [vmem:[%s2 + $0x90] sm:$0xff]
    %v103 = vld [vmem:[%s2 + $0x98] sm:$0xff]
    %v104 = vld [vmem:[%s2 + $0xa0] sm:$0xff]
    %v105 = vld [vmem:[%s2 + $0xa8] sm:$0xff]
    %v106 = vld [vmem:[%s2 + $0xb0] sm:$0xff]
    %v107 = vld [vmem:[%s2 + $0xb8] sm:$0xff]
    %v108 = vld [vmem:[%s2 + $0xc0] sm:$0xff]
    %v109 = vld [vmem:[%s2 + $0xc8] sm:$0xff]
    %v110 = vld [vmem:[%s2 + $0xd0] sm:$0xff]
    %v111 = vld [vmem:[%s2 + $0xd8] sm:$0xff]
    %v112 = vld [vmem:[%s2 + $0xe0] sm:$0xff]
    %v113 = vld [vmem:[%s2 + $0xe8] sm:$0xff]
    %v114 = vld [vmem:[%s2 + $0xf0] sm:$0xff]
    %v115 = vld [vmem:[%s2 + $0xf8] sm:$0xff]
    %v116 = vld [vmem:[%s2 + $0x100] sm:$0xff]
    %v117 = vld [vmem:[%s2 + $0x108] sm:$0xff]
    %v118 = vld [vmem:[%s2 + $0x110] sm:$0xff]
    %v119 = vld [vmem:[%s2 + $0x118] sm:$0xff]
    %v120 = vld [vmem:[%s2 + $0x120] sm:$0xff]
    %v121 = vld [vmem:[%s2 + $0x128] sm:$0xff]
    %v122 = vld [vmem:[%s2 + $0x130] sm:$0xff]
    %v123 = vld [vmem:[%s2 + $0x138] sm:$0xff]
    %v124 = vld [vmem:[%s2 + $0x140] sm:$0xff]
    %v125 = vld [vmem:[%s2 + $0x148] sm:$0xff]
    %v126 = vld [vmem:[%s2 + $0x150] sm:$0xff]
    %v127 = vld [vmem:[%s2 + $0x158] sm:$0xff]
    %v128 = vld [vmem:[%s2 + $0x160] sm:$0xff]
    %v129 = vld [vmem:[%s2 + $0x168] sm:$0xff]
    %v130 = vld [vmem:[%s2 + $0x170] sm:$0xff]
    %v131 = vld [vmem:[%s2 + $0x178] sm:$0xff]
    %v132 = vld [vmem:[%s3] sm:$0x3]
    %v134 = vlaneseq
    %v135 = vshrl.u32 %v134, 7
    %v136 = vsub.s32 0, %v135
    %v137 = vrot.slane %v132, %v136
    %v138 = vlaneseq
    %v139 = vshrl.u32 %v138, 7
    %v140 = vsub.s32 1, %v139
    %v141 = vrot.slane %v132, %v140
    %v192 = vunpack.c.l.b16 %v84
    %v193 = vunpack.c.h.b16 %v84
    %v194 = vunpack.c.l.b16 %v85
    %v195 = vunpack.c.h.b16 %v85
    %v196 = vunpack.c.l.b16 %v86
    %v197 = vunpack.c.h.b16 %v86
    %v198 = vunpack.c.l.b16 %v87
    %v199 = vunpack.c.h.b16 %v87
    %v200 = vunpack.c.l.b16 %v88
    %v201 = vunpack.c.h.b16 %v88
    %v202 = vunpack.c.l.b16 %v89
    %v203 = vunpack.c.h.b16 %v89
    %v204 = vunpack.c.l.b16 %v90
    %v205 = vunpack.c.h.b16 %v90
    %v206 = vunpack.c.l.b16 %v91
    %v207 = vunpack.c.h.b16 %v91
    %v208 = vunpack.c.l.b16 %v92
    %v209 = vunpack.c.h.b16 %v92
    %v210 = vunpack.c.l.b16 %v93
    %v211 = vunpack.c.h.b16 %v93
    %v212 = vunpack.c.l.b16 %v94
    %v213 = vunpack.c.h.b16 %v94
    %v214 = vunpack.c.l.b16 %v95
    %v215 = vunpack.c.h.b16 %v95
    %v216 = vunpack.c.l.b16 %v96
    %v217 = vunpack.c.h.b16 %v96
    %v218 = vunpack.c.l.b16 %v97
    %v219 = vunpack.c.h.b16 %v97
    %v220 = vunpack.c.l.b16 %v98
    %v221 = vunpack.c.h.b16 %v98
    %v222 = vunpack.c.l.b16 %v99
    %v223 = vunpack.c.h.b16 %v99
    %v224 = vunpack.c.l.b16 %v100
    %v225 = vunpack.c.h.b16 %v100
    %v226 = vunpack.c.l.b16 %v101
    %v227 = vunpack.c.h.b16 %v101
    %v228 = vunpack.c.l.b16 %v102
    %v229 = vunpack.c.h.b16 %v102
    %v230 = vunpack.c.l.b16 %v103
    %v231 = vunpack.c.h.b16 %v103
    %v232 = vunpack.c.l.b16 %v104
    %v233 = vunpack.c.h.b16 %v104
    %v234 = vunpack.c.l.b16 %v105
    %v235 = vunpack.c.h.b16 %v105
    %v236 = vunpack.c.l.b16 %v106
    %v237 = vunpack.c.h.b16 %v106
    %v238 = vunpack.c.l.b16 %v107
    %v239 = vunpack.c.h.b16 %v107
    %v240 = vunpack.c.l.b16 %v108
    %v241 = vunpack.c.h.b16 %v108
    %v242 = vunpack.c.l.b16 %v109
    %v243 = vunpack.c.h.b16 %v109
    %v244 = vunpack.c.l.b16 %v110
    %v245 = vunpack.c.h.b16 %v110
    %v246 = vunpack.c.l.b16 %v111
    %v247 = vunpack.c.h.b16 %v111
    %v248 = vunpack.c.l.b16 %v112
    %v249 = vunpack.c.h.b16 %v112
    %v250 = vunpack.c.l.b16 %v113
    %v251 = vunpack.c.h.b16 %v113
    %v252 = vunpack.c.l.b16 %v114
    %v253 = vunpack.c.h.b16 %v114
    %v254 = vunpack.c.l.b16 %v115
    %v255 = vunpack.c.h.b16 %v115
    %v256 = vunpack.c.l.b16 %v116
    %v257 = vunpack.c.h.b16 %v116
    %v258 = vunpack.c.l.b16 %v117
    %v259 = vunpack.c.h.b16 %v117
    %v260 = vunpack.c.l.b16 %v118
    %v261 = vunpack.c.h.b16 %v118
    %v262 = vunpack.c.l.b16 %v119
    %v263 = vunpack.c.h.b16 %v119
    %v264 = vunpack.c.l.b16 %v120
    %v265 = vunpack.c.h.b16 %v120
    %v266 = vunpack.c.l.b16 %v121
    %v267 = vunpack.c.h.b16 %v121
    %v268 = vunpack.c.l.b16 %v122
    %v269 = vunpack.c.h.b16 %v122
    %v270 = vunpack.c.l.b16 %v123
    %v271 = vunpack.c.h.b16 %v123
    %v272 = vunpack.c.l.b16 %v124
    %v273 = vunpack.c.h.b16 %v124
    %v274 = vunpack.c.l.b16 %v125
    %v275 = vunpack.c.h.b16 %v125
    %v276 = vunpack.c.l.b16 %v126
    %v277 = vunpack.c.h.b16 %v126
    %v278 = vunpack.c.l.b16 %v127
    %v279 = vunpack.c.h.b16 %v127
    %v280 = vunpack.c.l.b16 %v128
    %v281 = vunpack.c.h.b16 %v128
    %v282 = vunpack.c.l.b16 %v129
    %v283 = vunpack.c.h.b16 %v129
    %v284 = vunpack.c.l.b16 %v130
    %v285 = vunpack.c.h.b16 %v130
    %v286 = vunpack.c.l.b16 %v131
    %v287 = vunpack.c.h.b16 %v131
    %v288 = vpack.c.b16 %v194, %v192
    %v289 = vpack.c.b16 %v195, %v193
    %v290 = vpack.c.b16 %v198, %v196
    %v291 = vpack.c.b16 %v199, %v197
    %v292 = vpack.c.b16 %v202, %v200
    %v293 = vpack.c.b16 %v203, %v201
    %v294 = vpack.c.b16 %v206, %v204
    %v295 = vpack.c.b16 %v207, %v205
    %v296 = vpack.c.b16 %v210, %v208
    %v297 = vpack.c.b16 %v211, %v209
    %v298 = vpack.c.b16 %v214, %v212
    %v299 = vpack.c.b16 %v215, %v213
    %v300 = vpack.c.b16 %v218, %v216
    %v301 = vpack.c.b16 %v219, %v217
    %v302 = vpack.c.b16 %v222, %v220
    %v303 = vpack.c.b16 %v223, %v221
    %v304 = vpack.c.b16 %v226, %v224
    %v305 = vpack.c.b16 %v227, %v225
    %v306 = vpack.c.b16 %v230, %v228
    %v307 = vpack.c.b16 %v231, %v229
    %v308 = vpack.c.b16 %v234, %v232
    %v309 = vpack.c.b16 %v235, %v233
    %v310 = vpack.c.b16 %v238, %v236
    %v311 = vpack.c.b16 %v239, %v237
    %v312 = vpack.c.b16 %v242, %v240
    %v313 = vpack.c.b16 %v243, %v241
    %v314 = vpack.c.b16 %v246, %v244
    %v315 = vpack.c.b16 %v247, %v245
    %v316 = vpack.c.b16 %v250, %v248
    %v317 = vpack.c.b16 %v251, %v249
    %v318 = vpack.c.b16 %v254, %v252
    %v319 = vpack.c.b16 %v255, %v253
    %v320 = vpack.c.b16 %v258, %v256
    %v321 = vpack.c.b16 %v259, %v257
    %v322 = vpack.c.b16 %v262, %v260
    %v323 = vpack.c.b16 %v263, %v261
    %v324 = vpack.c.b16 %v266, %v264
    %v325 = vpack.c.b16 %v267, %v265
    %v326 = vpack.c.b16 %v270, %v268
    %v327 = vpack.c.b16 %v271, %v269
    %v328 = vpack.c.b16 %v274, %v272
    %v329 = vpack.c.b16 %v275, %v273
    %v330 = vpack.c.b16 %v278, %v276
    %v331 = vpack.c.b16 %v279, %v277
    %v332 = vpack.c.b16 %v282, %v280
    %v333 = vpack.c.b16 %v283, %v281
    %v334 = vpack.c.b16 %v286, %v284
    %v335 = vpack.c.b16 %v287, %v285
    %384 = vmatprep.subr.bf16.mxu0 %v289
    %385 = vmatpush1.bf16.msra.mxu0 %v288
    %386 = vmatprep.subr.bf16.mxu0 %v291
    %387 = vmatpush1.bf16.msra.mxu0 %v290
    %388 = vmatprep.subr.bf16.mxu0 %v293
    %389 = vmatpush1.bf16.msra.mxu0 %v292
    %390 = vmatprep.subr.bf16.mxu0 %v295
    %391 = vmatpush1.bf16.msra.mxu0 %v294
    %392 = vmatprep.subr.bf16.mxu0 %v297
    %393 = vmatpush1.bf16.msra.mxu0 %v296
    %394 = vmatprep.subr.bf16.mxu0 %v299
    %395 = vmatpush1.bf16.msra.mxu0 %v298
    %396 = vmatprep.subr.bf16.mxu0 %v301
    %397 = vmatpush1.bf16.msra.mxu0 %v300
    %398 = vmatprep.subr.bf16.mxu0 %v303
    %399 = vmatpush1.bf16.msra.mxu0 %v302
    %400 = vmatprep.subr.bf16.mxu0 %v305
    %401 = vmatpush1.bf16.msra.mxu0 %v304
    %402 = vmatprep.subr.bf16.mxu0 %v307
    %403 = vmatpush1.bf16.msra.mxu0 %v306
    %404 = vmatprep.subr.bf16.mxu0 %v309
    %405 = vmatpush1.bf16.msra.mxu0 %v308
    %406 = vmatprep.subr.bf16.mxu0 %v311
    %407 = vmatpush1.bf16.msra.mxu0 %v310
    %408 = vmatprep.subr.bf16.mxu0 %v313
    %409 = vmatpush1.bf16.msra.mxu0 %v312
    %410 = vmatprep.subr.bf16.mxu0 %v315
    %411 = vmatpush1.bf16.msra.mxu0 %v314
    %412 = vmatprep.subr.bf16.mxu0 %v317
    %413 = vmatpush1.bf16.msra.mxu0 %v316
    %414 = vmatprep.subr.bf16.mxu0 %v319
    %415 = vmatpush1.bf16.msra.mxu0 %v318
    %416 = vmatprep.mubr.bf16.mxu0 %v82
    %417 = vmatmul.mubr.bf16.gmra.mrb[0].mxu0 %v81
    %v418 = vpop.f32.mrb[0].mxu0
    %v419 = vadd.f32 %v137, %v418
    %v420 = vpop.f32.mrb[0].mxu0
    %v421 = vadd.f32 %v141, %v420
    %v422 = vpop.f32.mrb[0].mxu0
    %v423 = vadd.f32 %v137, %v422
    %v424 = vpop.f32.mrb[0].mxu0
    %v425 = vadd.f32 %v141, %v424
    %426 = vdwg.mxu0
    %427 = vmatprep.subr.bf16.mxu0 %v321
    %428 = vmatpush1.bf16.msra.mxu0 %v320
    %429 = vmatprep.subr.bf16.mxu0 %v323
    %430 = vmatpush1.bf16.msra.mxu0 %v322
    %431 = vmatprep.subr.bf16.mxu0 %v325
    %432 = vmatpush1.bf16.msra.mxu0 %v324
    %433 = vmatprep.subr.bf16.mxu0 %v327
    %434 = vmatpush1.bf16.msra.mxu0 %v326
    %435 = vmatprep.subr.bf16.mxu0 %v329
    %436 = vmatpush1.bf16.msra.mxu0 %v328
    %437 = vmatprep.subr.bf16.mxu0 %v331
    %438 = vmatpush1.bf16.msra.mxu0 %v330
    %439 = vmatprep.subr.bf16.mxu0 %v333
    %440 = vmatpush1.bf16.msra.mxu0 %v332
    %441 = vmatprep.subr.bf16.mxu0 %v335
    %442 = vmatpush1.bf16.msra.mxu0 %v334
    %443 = vmatprep.subr.bf16.mxu0 0
    %444 = vmatpush1.bf16.msra.mxu0 0
    %445 = vmatprep.subr.bf16.mxu0 0
    %446 = vmatpush1.bf16.msra.mxu0 0
    %447 = vmatprep.subr.bf16.mxu0 0
    %448 = vmatpush1.bf16.msra.mxu0 0
    %449 = vmatprep.subr.bf16.mxu0 0
    %450 = vmatpush1.bf16.msra.mxu0 0
    %451 = vmatprep.subr.bf16.mxu0 0
    %452 = vmatpush1.bf16.msra.mxu0 0
    %453 = vmatprep.subr.bf16.mxu0 0
    %454 = vmatpush1.bf16.msra.mxu0 0
    %455 = vmatprep.subr.bf16.mxu0 0
    %456 = vmatpush1.bf16.msra.mxu0 0
    %457 = vmatprep.subr.bf16.mxu0 0
    %458 = vmatpush1.bf16.msra.mxu0 0
    %459 = vmatprep.mubr.bf16.mxu0 0
    %460 = vmatmul.mubr.bf16.gmra.mrb[0].mxu0 %v83
    %v461 = vpop.f32.mrb[0].mxu0
    %v462 = vadd.f32 %v419, %v461
    %v463 = vpop.f32.mrb[0].mxu0
    %v464 = vadd.f32 %v421, %v463
    %v465 = vpop.f32.mrb[0].mxu0
    %v466 = vadd.f32 %v423, %v465
    %v467 = vpop.f32.mrb[0].mxu0
    %v468 = vadd.f32 %v425, %v467
    %469 = vdwg.mxu0
    %v470 = vmax.f32 %v462, 0.0
    %v471 = vmax.f32 %v464, 0.0
    %v472 = vmax.f32 %v466, 0.0
    %v473 = vmax.f32 %v468, 0.0
    %v474 = vlaneseq
    %vm475 = vcmp.ge.s32.totalorder %v474, 0
    %vm476 = vcmp.lt.s32.totalorder %v474, 256
    %vm477 = vmand %vm475, %vm476
    %478 = vst.msk [vmem:[#allocation3] ss:$8 sm:$0x3] %vm477, 0.0
    %479 = vst.msk [vmem:[#allocation3] ss:$8 sm:$0x0] %vm477, 0.0
    %v484 = vrot.slane %v470, 7
    %v485 = vrot.slane %v471, 7
    %v486 = vrot.slane %v472, 7
    %v487 = vsel %vm56, %v484, %v486
    %v488 = vrot.slane %v473, 7
    %v489 = vsel %vm56, %v485, %v488
    %494 = vst [vmem:[#allocation3] sm:$0xfe] %v484
    %495 = vst [vmem:[#allocation3 + $0x8] sm:$0xfe] %v485
    %496 = vst [vmem:[#allocation3 + $0x30] sm:$0xff] %v487
    %497 = vst [vmem:[#allocation3 + $0x38] sm:$0xff] %v489
    %498 = vst [vmem:[#allocation3 + $0x10] sm:$0xff] %v470
    %499 = vst [vmem:[#allocation3 + $0x18] sm:$0xff] %v471
    %500 = vst [vmem:[#allocation3 + $0x40] sm:$0xff] %v472
    %501 = vst [vmem:[#allocation3 + $0x48] sm:$0xff] %v473
    %v502 = vrot.slane %v470, 1
    %v503 = vrot.slane %v472, 1
    %v504 = vsel %vm66, %v502, %v503
    %v505 = vrot.slane %v471, 1
    %v506 = vrot.slane %v473, 1
    %v507 = vsel %vm66, %v505, %v506
    %512 = vst [vmem:[#allocation3 + $0x20] sm:$0xff] %v504
    %513 = vst [vmem:[#allocation3 + $0x28] sm:$0xff] %v507
    %514 = vst [vmem:[#allocation3 + $0x50] sm:$0x7f] %v503
    %515 = vst [vmem:[#allocation3 + $0x58] sm:$0x7f] %v506
    %s516 = scalar_lea.vmem [#allocation3], 87
    %517 = vst.msk [vmem:[%s516] ss:$8 sm:$0x3] %vm477, 0.0
    %518 = vst.msk [vmem:[%s516] ss:$8 sm:$0x0] %vm477, 0.0
    %v519 = vld [vmem:[#allocation3] sm:$0xff]
    %v520 = vld [vmem:[#allocation3 + $0x8] sm:$0xff]
    %v521 = vld [vmem:[#allocation3 + $0x10] sm:$0xff]
    %v522 = vld [vmem:[#allocation3 + $0x18] sm:$0xff]
    %v523 = vld [vmem:[#allocation3 + $0x20] sm:$0xff]
    %v524 = vld [vmem:[#allocation3 + $0x28] sm:$0xff]
    %v525 = vld [vmem:[#allocation3 + $0x30] sm:$0xff]
    %v526 = vld [vmem:[#allocation3 + $0x38] sm:$0xff]
    %v527 = vld [vmem:[#allocation3 + $0x40] sm:$0xff]
    %v528 = vld [vmem:[#allocation3 + $0x48] sm:$0xff]
    %v529 = vld [vmem:[#allocation3 + $0x50] sm:$0xff]
    %v530 = vld [vmem:[#allocation3 + $0x58] sm:$0xff]
    %v531 = vpack.c.bf16 %v525, %v519
    %v532 = vpack.c.bf16 %v526, %v520
    %v533 = vpack.c.bf16 %v527, %v521
    %v534 = vpack.c.bf16 %v528, %v522
    %v535 = vpack.c.bf16 %v529, %v523
    %v536 = vpack.c.bf16 %v530, %v524
    %v537 = vld [vmem:[%s4] sm:$0xf]
    %v538 = vld [vmem:[%s4 + $0x4] sm:$0xf]
    %v539 = vld [vmem:[%s4 + $0x8] sm:$0xf]
    %v540 = vld [vmem:[%s4 + $0xc] sm:$0xf]
    %v541 = vld [vmem:[%s4 + $0x10] sm:$0xf]
    %v542 = vld [vmem:[%s4 + $0x14] sm:$0xf]
    %v543 = vld [vmem:[%s4 + $0x18] sm:$0xf]
    %v544 = vld [vmem:[%s4 + $0x1c] sm:$0xf]
    %v545 = vld [vmem:[%s4 + $0x20] sm:$0xf]
    %v546 = vld [vmem:[%s4 + $0x24] sm:$0xf]
    %v547 = vld [vmem:[%s4 + $0x28] sm:$0xf]
    %v548 = vld [vmem:[%s4 + $0x2c] sm:$0xf]
    %v549 = vld [vmem:[%s4 + $0x30] sm:$0xf]
    %v550 = vld [vmem:[%s4 + $0x34] sm:$0xf]
    %v551 = vld [vmem:[%s4 + $0x38] sm:$0xf]
    %v552 = vld [vmem:[%s4 + $0x3c] sm:$0xf]
    %v553 = vld [vmem:[%s4 + $0x40] sm:$0xf]
    %v554 = vld [vmem:[%s4 + $0x44] sm:$0xf]
    %v555 = vld [vmem:[%s4 + $0x48] sm:$0xf]
    %v556 = vld [vmem:[%s4 + $0x4c] sm:$0xf]
    %v557 = vld [vmem:[%s4 + $0x50] sm:$0xf]
    %v558 = vld [vmem:[%s4 + $0x54] sm:$0xf]
    %v559 = vld [vmem:[%s4 + $0x58] sm:$0xf]
    %v560 = vld [vmem:[%s4 + $0x5c] sm:$0xf]
    %v561 = vld [vmem:[%s4 + $0x60] sm:$0xf]
    %v562 = vld [vmem:[%s4 + $0x64] sm:$0xf]
    %v563 = vld [vmem:[%s4 + $0x68] sm:$0xf]
    %v564 = vld [vmem:[%s4 + $0x6c] sm:$0xf]
    %v565 = vld [vmem:[%s4 + $0x70] sm:$0xf]
    %v566 = vld [vmem:[%s4 + $0x74] sm:$0xf]
    %v567 = vld [vmem:[%s4 + $0x78] sm:$0xf]
    %v568 = vld [vmem:[%s4 + $0x7c] sm:$0xf]
    %v569 = vld [vmem:[%s4 + $0x80] sm:$0xf]
    %v570 = vld [vmem:[%s4 + $0x84] sm:$0xf]
    %v571 = vld [vmem:[%s4 + $0x88] sm:$0xf]
    %v572 = vld [vmem:[%s4 + $0x8c] sm:$0xf]
    %v573 = vld [vmem:[%s4 + $0x90] sm:$0xf]
    %v574 = vld [vmem:[%s4 + $0x94] sm:$0xf]
    %v575 = vld [vmem:[%s4 + $0x98] sm:$0xf]
    %v576 = vld [vmem:[%s4 + $0x9c] sm:$0xf]
    %v577 = vld [vmem:[%s4 + $0xa0] sm:$0xf]
    %v578 = vld [vmem:[%s4 + $0xa4] sm:$0xf]
    %v579 = vld [vmem:[%s4 + $0xa8] sm:$0xf]
    %v580 = vld [vmem:[%s4 + $0xac] sm:$0xf]
    %v581 = vld [vmem:[%s4 + $0xb0] sm:$0xf]
    %v582 = vld [vmem:[%s4 + $0xb4] sm:$0xf]
    %v583 = vld [vmem:[%s4 + $0xb8] sm:$0xf]
    %v584 = vld [vmem:[%s4 + $0xbc] sm:$0xf]
    %v585 = vld [vmem:[%s4 + $0xc0] sm:$0xf]
    %v586 = vld [vmem:[%s4 + $0xc4] sm:$0xf]
    %v587 = vld [vmem:[%s4 + $0xc8] sm:$0xf]
    %v588 = vld [vmem:[%s4 + $0xcc] sm:$0xf]
    %v589 = vld [vmem:[%s4 + $0xd0] sm:$0xf]
    %v590 = vld [vmem:[%s4 + $0xd4] sm:$0xf]
    %v591 = vld [vmem:[%s4 + $0xd8] sm:$0xf]
    %v592 = vld [vmem:[%s4 + $0xdc] sm:$0xf]
    %v593 = vld [vmem:[%s4 + $0xe0] sm:$0xf]
    %v594 = vld [vmem:[%s4 + $0xe4] sm:$0xf]
    %v595 = vld [vmem:[%s4 + $0xe8] sm:$0xf]
    %v596 = vld [vmem:[%s4 + $0xec] sm:$0xf]
    %v597 = vld [vmem:[%s4 + $0xf0] sm:$0xf]
    %v598 = vld [vmem:[%s4 + $0xf4] sm:$0xf]
    %v599 = vld [vmem:[%s4 + $0xf8] sm:$0xf]
    %v600 = vld [vmem:[%s4 + $0xfc] sm:$0xf]
    %v601 = vld [vmem:[%s4 + $0x100] sm:$0xf]
    %v602 = vld [vmem:[%s4 + $0x104] sm:$0xf]
    %v603 = vld [vmem:[%s4 + $0x108] sm:$0xf]
    %v604 = vld [vmem:[%s4 + $0x10c] sm:$0xf]
    %v605 = vld [vmem:[%s4 + $0x110] sm:$0xf]
    %v606 = vld [vmem:[%s4 + $0x114] sm:$0xf]
    %v607 = vld [vmem:[%s4 + $0x118] sm:$0xf]
    %v608 = vld [vmem:[%s4 + $0x11c] sm:$0xf]
    %v609 = vld [vmem:[%s4 + $0x120] sm:$0xf]
    %v610 = vld [vmem:[%s4 + $0x124] sm:$0xf]
    %v611 = vld [vmem:[%s4 + $0x128] sm:$0xf]
    %v612 = vld [vmem:[%s4 + $0x12c] sm:$0xf]
    %v613 = vld [vmem:[%s4 + $0x130] sm:$0xf]
    %v614 = vld [vmem:[%s4 + $0x134] sm:$0xf]
    %v615 = vld [vmem:[%s4 + $0x138] sm:$0xf]
    %v616 = vld [vmem:[%s4 + $0x13c] sm:$0xf]
    %v617 = vld [vmem:[%s4 + $0x140] sm:$0xf]
    %v618 = vld [vmem:[%s4 + $0x144] sm:$0xf]
    %v619 = vld [vmem:[%s4 + $0x148] sm:$0xf]
    %v620 = vld [vmem:[%s4 + $0x14c] sm:$0xf]
    %v621 = vld [vmem:[%s4 + $0x150] sm:$0xf]
    %v622 = vld [vmem:[%s4 + $0x154] sm:$0xf]
    %v623 = vld [vmem:[%s4 + $0x158] sm:$0xf]
    %v624 = vld [vmem:[%s4 + $0x15c] sm:$0xf]
    %v625 = vld [vmem:[%s4 + $0x160] sm:$0xf]
    %v626 = vld [vmem:[%s4 + $0x164] sm:$0xf]
    %v627 = vld [vmem:[%s4 + $0x168] sm:$0xf]
    %v628 = vld [vmem:[%s4 + $0x16c] sm:$0xf]
    %v629 = vld [vmem:[%s4 + $0x170] sm:$0xf]
    %v630 = vld [vmem:[%s4 + $0x174] sm:$0xf]
    %v631 = vld [vmem:[%s4 + $0x178] sm:$0xf]
    %v632 = vld [vmem:[%s4 + $0x17c] sm:$0xf]
    %v633 = vld [vmem:[%s5] sm:$0x1]
    %v635 = vlaneseq
    %v636 = vshrl.u32 %v635, 7
    %v637 = vsub.s32 0, %v636
    %v638 = vrot.slane %v633, %v637
    %v736 = vunpack.c.l.b16 %v537
    %v737 = vunpack.c.l.b16 %v538
    %v738 = vunpack.c.l.b16 %v539
    %v739 = vunpack.c.l.b16 %v540
    %v740 = vunpack.c.l.b16 %v541
    %v741 = vunpack.c.l.b16 %v542
    %v742 = vunpack.c.l.b16 %v543
    %v743 = vunpack.c.l.b16 %v544
    %v744 = vunpack.c.l.b16 %v545
    %v745 = vunpack.c.l.b16 %v546
    %v746 = vunpack.c.l.b16 %v547
    %v747 = vunpack.c.l.b16 %v548
    %v748 = vunpack.c.l.b16 %v549
    %v749 = vunpack.c.l.b16 %v550
    %v750 = vunpack.c.l.b16 %v551
    %v751 = vunpack.c.l.b16 %v552
    %v752 = vunpack.c.l.b16 %v553
    %v753 = vunpack.c.l.b16 %v554
    %v754 = vunpack.c.l.b16 %v555
    %v755 = vunpack.c.l.b16 %v556
    %v756 = vunpack.c.l.b16 %v557
    %v757 = vunpack.c.l.b16 %v558
    %v758 = vunpack.c.l.b16 %v559
    %v759 = vunpack.c.l.b16 %v560
    %v760 = vunpack.c.l.b16 %v561
    %v761 = vunpack.c.l.b16 %v562
    %v762 = vunpack.c.l.b16 %v563
    %v763 = vunpack.c.l.b16 %v564
    %v764 = vunpack.c.l.b16 %v565
    %v765 = vunpack.c.l.b16 %v566
    %v766 = vunpack.c.l.b16 %v567
    %v767 = vunpack.c.l.b16 %v568
    %v768 = vunpack.c.l.b16 %v569
    %v769 = vunpack.c.l.b16 %v570
    %v770 = vunpack.c.l.b16 %v571
    %v771 = vunpack.c.l.b16 %v572
    %v772 = vunpack.c.l.b16 %v573
    %v773 = vunpack.c.l.b16 %v574
    %v774 = vunpack.c.l.b16 %v575
    %v775 = vunpack.c.l.b16 %v576
    %v776 = vunpack.c.l.b16 %v577
    %v777 = vunpack.c.l.b16 %v578
    %v778 = vunpack.c.l.b16 %v579
    %v779 = vunpack.c.l.b16 %v580
    %v780 = vunpack.c.l.b16 %v581
    %v781 = vunpack.c.l.b16 %v582
    %v782 = vunpack.c.l.b16 %v583
    %v783 = vunpack.c.l.b16 %v584
    %v784 = vunpack.c.l.b16 %v585
    %v785 = vunpack.c.l.b16 %v586
    %v786 = vunpack.c.l.b16 %v587
    %v787 = vunpack.c.l.b16 %v588
    %v788 = vunpack.c.l.b16 %v589
    %v789 = vunpack.c.l.b16 %v590
    %v790 = vunpack.c.l.b16 %v591
    %v791 = vunpack.c.l.b16 %v592
    %v792 = vunpack.c.l.b16 %v593
    %v793 = vunpack.c.l.b16 %v594
    %v794 = vunpack.c.l.b16 %v595
    %v795 = vunpack.c.l.b16 %v596
    %v796 = vunpack.c.l.b16 %v597
    %v797 = vunpack.c.l.b16 %v598
    %v798 = vunpack.c.l.b16 %v599
    %v799 = vunpack.c.l.b16 %v600
    %v800 = vunpack.c.l.b16 %v601
    %v801 = vunpack.c.l.b16 %v602
    %v802 = vunpack.c.l.b16 %v603
    %v803 = vunpack.c.l.b16 %v604
    %v804 = vunpack.c.l.b16 %v605
    %v805 = vunpack.c.l.b16 %v606
    %v806 = vunpack.c.l.b16 %v607
    %v807 = vunpack.c.l.b16 %v608
    %v808 = vunpack.c.l.b16 %v609
    %v809 = vunpack.c.l.b16 %v610
    %v810 = vunpack.c.l.b16 %v611
    %v811 = vunpack.c.l.b16 %v612
    %v812 = vunpack.c.l.b16 %v613
    %v813 = vunpack.c.l.b16 %v614
    %v814 = vunpack.c.l.b16 %v615
    %v815 = vunpack.c.l.b16 %v616
    %v816 = vunpack.c.l.b16 %v617
    %v817 = vunpack.c.l.b16 %v618
    %v818 = vunpack.c.l.b16 %v619
    %v819 = vunpack.c.l.b16 %v620
    %v820 = vunpack.c.l.b16 %v621
    %v821 = vunpack.c.l.b16 %v622
    %v822 = vunpack.c.l.b16 %v623
    %v823 = vunpack.c.l.b16 %v624
    %v824 = vunpack.c.l.b16 %v625
    %v825 = vunpack.c.l.b16 %v626
    %v826 = vunpack.c.l.b16 %v627
    %v827 = vunpack.c.l.b16 %v628
    %v828 = vunpack.c.l.b16 %v629
    %v829 = vunpack.c.l.b16 %v630
    %v830 = vunpack.c.l.b16 %v631
    %v831 = vunpack.c.l.b16 %v632
    %v832 = vpack.c.b16 %v737, %v736
    %v833 = vpack.c.b16 %v739, %v738
    %v834 = vpack.c.b16 %v741, %v740
    %v835 = vpack.c.b16 %v743, %v742
    %v836 = vpack.c.b16 %v745, %v744
    %v837 = vpack.c.b16 %v747, %v746
    %v838 = vpack.c.b16 %v749, %v748
    %v839 = vpack.c.b16 %v751, %v750
    %v840 = vpack.c.b16 %v753, %v752
    %v841 = vpack.c.b16 %v755, %v754
    %v842 = vpack.c.b16 %v757, %v756
    %v843 = vpack.c.b16 %v759, %v758
    %v844 = vpack.c.b16 %v761, %v760
    %v845 = vpack.c.b16 %v763, %v762
    %v846 = vpack.c.b16 %v765, %v764
    %v847 = vpack.c.b16 %v767, %v766
    %v848 = vpack.c.b16 %v769, %v768
    %v849 = vpack.c.b16 %v771, %v770
    %v850 = vpack.c.b16 %v773, %v772
    %v851 = vpack.c.b16 %v775, %v774
    %v852 = vpack.c.b16 %v777, %v776
    %v853 = vpack.c.b16 %v779, %v778
    %v854 = vpack.c.b16 %v781, %v780
    %v855 = vpack.c.b16 %v783, %v782
    %v856 = vpack.c.b16 %v785, %v784
    %v857 = vpack.c.b16 %v787, %v786
    %v858 = vpack.c.b16 %v789, %v788
    %v859 = vpack.c.b16 %v791, %v790
    %v860 = vpack.c.b16 %v793, %v792
    %v861 = vpack.c.b16 %v795, %v794
    %v862 = vpack.c.b16 %v797, %v796
    %v863 = vpack.c.b16 %v799, %v798
    %v864 = vpack.c.b16 %v801, %v800
    %v865 = vpack.c.b16 %v803, %v802
    %v866 = vpack.c.b16 %v805, %v804
    %v867 = vpack.c.b16 %v807, %v806
    %v868 = vpack.c.b16 %v809, %v808
    %v869 = vpack.c.b16 %v811, %v810
    %v870 = vpack.c.b16 %v813, %v812
    %v871 = vpack.c.b16 %v815, %v814
    %v872 = vpack.c.b16 %v817, %v816
    %v873 = vpack.c.b16 %v819, %v818
    %v874 = vpack.c.b16 %v821, %v820
    %v875 = vpack.c.b16 %v823, %v822
    %v876 = vpack.c.b16 %v825, %v824
    %v877 = vpack.c.b16 %v827, %v826
    %v878 = vpack.c.b16 %v829, %v828
    %v879 = vpack.c.b16 %v831, %v830
    %928 = vmatprep.subr.bf16.mxu0 0
    %929 = vmatpush1.bf16.msra.mxu0 %v832
    %930 = vmatprep.subr.bf16.mxu0 0
    %931 = vmatpush1.bf16.msra.mxu0 %v833
    %932 = vmatprep.subr.bf16.mxu0 0
    %933 = vmatpush1.bf16.msra.mxu0 %v834
    %934 = vmatprep.subr.bf16.mxu0 0
    %935 = vmatpush1.bf16.msra.mxu0 %v835
    %936 = vmatprep.subr.bf16.mxu0 0
    %937 = vmatpush1.bf16.msra.mxu0 %v836
    %938 = vmatprep.subr.bf16.mxu0 0
    %939 = vmatpush1.bf16.msra.mxu0 %v837
    %940 = vmatprep.subr.bf16.mxu0 0
    %941 = vmatpush1.bf16.msra.mxu0 %v838
    %942 = vmatprep.subr.bf16.mxu0 0
    %943 = vmatpush1.bf16.msra.mxu0 %v839
    %944 = vmatprep.subr.bf16.mxu0 0
    %945 = vmatpush1.bf16.msra.mxu0 %v840
    %946 = vmatprep.subr.bf16.mxu0 0
    %947 = vmatpush1.bf16.msra.mxu0 %v841
    %948 = vmatprep.subr.bf16.mxu0 0
    %949 = vmatpush1.bf16.msra.mxu0 %v842
    %950 = vmatprep.subr.bf16.mxu0 0
    %951 = vmatpush1.bf16.msra.mxu0 %v843
    %952 = vmatprep.subr.bf16.mxu0 0
    %953 = vmatpush1.bf16.msra.mxu0 %v844
    %954 = vmatprep.subr.bf16.mxu0 0
    %955 = vmatpush1.bf16.msra.mxu0 %v845
    %956 = vmatprep.subr.bf16.mxu0 0
    %957 = vmatpush1.bf16.msra.mxu0 %v846
    %958 = vmatprep.subr.bf16.mxu0 0
    %959 = vmatpush1.bf16.msra.mxu0 %v847
    %960 = vmatprep.mubr.bf16.mxu0 %v532
    %961 = vmatmul.mubr.bf16.gmra.mrb[0].mxu0 %v531
    %v962 = vpop.f32.mrb[0].mxu0
    %v963 = vadd.f32 %v638, %v962
    %v964 = vpop.f32.mrb[0].mxu0
    %v965 = vpop.f32.mrb[0].mxu0
    %v966 = vadd.f32 %v638, %v965
    %v967 = vpop.f32.mrb[0].mxu0
    %968 = vdwg.mxu0
    %969 = vmatprep.subr.bf16.mxu0 0
    %970 = vmatpush1.bf16.msra.mxu0 %v848
    %971 = vmatprep.subr.bf16.mxu0 0
    %972 = vmatpush1.bf16.msra.mxu0 %v849
    %973 = vmatprep.subr.bf16.mxu0 0
    %974 = vmatpush1.bf16.msra.mxu0 %v850
    %975 = vmatprep.subr.bf16.mxu0 0
    %976 = vmatpush1.bf16.msra.mxu0 %v851
    %977 = vmatprep.subr.bf16.mxu0 0
    %978 = vmatpush1.bf16.msra.mxu0 %v852
    %979 = vmatprep.subr.bf16.mxu0 0
    %980 = vmatpush1.bf16.msra.mxu0 %v853
    %981 = vmatprep.subr.bf16.mxu0 0
    %982 = vmatpush1.bf16.msra.mxu0 %v854
    %983 = vmatprep.subr.bf16.mxu0 0
    %984 = vmatpush1.bf16.msra.mxu0 %v855
    %985 = vmatprep.subr.bf16.mxu0 0
    %986 = vmatpush1.bf16.msra.mxu0 %v856
    %987 = vmatprep.subr.bf16.mxu0 0
    %988 = vmatpush1.bf16.msra.mxu0 %v857
    %989 = vmatprep.subr.bf16.mxu0 0
    %990 = vmatpush1.bf16.msra.mxu0 %v858
    %991 = vmatprep.subr.bf16.mxu0 0
    %992 = vmatpush1.bf16.msra.mxu0 %v859
    %993 = vmatprep.subr.bf16.mxu0 0
    %994 = vmatpush1.bf16.msra.mxu0 %v860
    %995 = vmatprep.subr.bf16.mxu0 0
    %996 = vmatpush1.bf16.msra.mxu0 %v861
    %997 = vmatprep.subr.bf16.mxu0 0
    %998 = vmatpush1.bf16.msra.mxu0 %v862
    %999 = vmatprep.subr.bf16.mxu0 0
    %1000 = vmatpush1.bf16.msra.mxu0 %v863
    %1001 = vmatprep.mubr.bf16.mxu0 %v534
    %1002 = vmatmul.mubr.bf16.gmra.mrb[0].mxu0 %v533
    %v1003 = vpop.f32.mrb[0].mxu0
    %v1004 = vadd.f32 %v963, %v1003
    %v1005 = vpop.f32.mrb[0].mxu0
    %v1006 = vpop.f32.mrb[0].mxu0
    %v1007 = vadd.f32 %v966, %v1006
    %v1008 = vpop.f32.mrb[0].mxu0
    %1009 = vdwg.mxu0
    %1010 = vmatprep.subr.bf16.mxu0 0
    %1011 = vmatpush1.bf16.msra.mxu0 %v864
    %1012 = vmatprep.subr.bf16.mxu0 0
    %1013 = vmatpush1.bf16.msra.mxu0 %v865
    %1014 = vmatprep.subr.bf16.mxu0 0
    %1015 = vmatpush1.bf16.msra.mxu0 %v866
    %1016 = vmatprep.subr.bf16.mxu0 0
    %1017 = vmatpush1.bf16.msra.mxu0 %v867
    %1018 = vmatprep.subr.bf16.mxu0 0
    %1019 = vmatpush1.bf16.msra.mxu0 %v868
    %1020 = vmatprep.subr.bf16.mxu0 0
    %1021 = vmatpush1.bf16.msra.mxu0 %v869
    %1022 = vmatprep.subr.bf16.mxu0 0
    %1023 = vmatpush1.bf16.msra.mxu0 %v870
    %1024 = vmatprep.subr.bf16.mxu0 0
    %1025 = vmatpush1.bf16.msra.mxu0 %v871
    %1026 = vmatprep.subr.bf16.mxu0 0
    %1027 = vmatpush1.bf16.msra.mxu0 %v872
    %1028 = vmatprep.subr.bf16.mxu0 0
    %1029 = vmatpush1.bf16.msra.mxu0 %v873
    %1030 = vmatprep.subr.bf16.mxu0 0
    %1031 = vmatpush1.bf16.msra.mxu0 %v874
    %1032 = vmatprep.subr.bf16.mxu0 0
    %1033 = vmatpush1.bf16.msra.mxu0 %v875
    %1034 = vmatprep.subr.bf16.mxu0 0
    %1035 = vmatpush1.bf16.msra.mxu0 %v876
    %1036 = vmatprep.subr.bf16.mxu0 0
    %1037 = vmatpush1.bf16.msra.mxu0 %v877
    %1038 = vmatprep.subr.bf16.mxu0 0
    %1039 = vmatpush1.bf16.msra.mxu0 %v878
    %1040 = vmatprep.subr.bf16.mxu0 0
    %1041 = vmatpush1.bf16.msra.mxu0 %v879
    %1042 = vmatprep.mubr.bf16.mxu0 %v536
    %1043 = vmatmul.mubr.bf16.gmra.mrb[0].mxu0 %v535
    %v1044 = vpop.f32.mrb[0].mxu0
    %v1045 = vadd.f32 %v1004, %v1044
    %v1046 = vpop.f32.mrb[0].mxu0
    %v1047 = vpop.f32.mrb[0].mxu0
    %v1048 = vadd.f32 %v1007, %v1047
    %v1049 = vpop.f32.mrb[0].mxu0
    %1050 = vdwg.mxu0
    %v1051 = vstv %s51
    %v1052 = vmul.f32 %v1051, %v1045
    %v1053 = vmul.f32 %v1051, %v1048
    %v1054 = vsub.f32 %v49, %v1052
    %v1055 = vsub.f32 %v50, %v1053
    %1056 = vst [vmem:[#allocation2] sm:$0x1] 0.0
    %v1059 = vrot.slane %v1054, 7
    %v1060 = vrot.slane %v1055, 7
    %v1061 = vsel %vm56, %v1059, %v1060
    %1064 = vst [vmem:[#allocation2] sm:$0xfe] %v1059
    %1065 = vst [vmem:[#allocation2 + $0x18] sm:$0xff] %v1061
    %1066 = vst [vmem:[#allocation2 + $0x8] sm:$0xff] %v1054
    %1067 = vst [vmem:[#allocation2 + $0x20] sm:$0xff] %v1055
    %v1068 = vrot.slane %v1054, 1
    %v1069 = vrot.slane %v1055, 1
    %v1070 = vsel %vm66, %v1068, %v1069
    %1073 = vst [vmem:[#allocation2 + $0x10] sm:$0xff] %v1070
    %1074 = vst [vmem:[#allocation2 + $0x28] sm:$0x7f] %v1069
    %1075 = vst [vmem:[#allocation2 + $0x2f] sm:$0x1] 0.0
    %v1076 = vld [vmem:[#allocation2] sm:$0xff]
    %v1077 = vld [vmem:[#allocation2 + $0x8] sm:$0xff]
    %v1078 = vld [vmem:[#allocation2 + $0x10] sm:$0xff]
    %v1079 = vld [vmem:[#allocation2 + $0x18] sm:$0xff]
    %v1080 = vld [vmem:[#allocation2 + $0x20] sm:$0xff]
    %v1081 = vld [vmem:[#allocation2 + $0x28] sm:$0xff]
    %v1082 = vpack.c.bf16 %v1079, %v1076
    %v1083 = vpack.c.bf16 %v1080, %v1077
    %v1084 = vpack.c.bf16 %v1081, %v1078
    %v1085 = vld [vmem:[%s6] sm:$0xff]
    %v1086 = vld [vmem:[%s6 + $0x8] sm:$0xff]
    %v1087 = vld [vmem:[%s6 + $0x10] sm:$0xff]
    %v1088 = vld [vmem:[%s6 + $0x18] sm:$0xff]
    %v1089 = vld [vmem:[%s6 + $0x20] sm:$0xff]
    %v1090 = vld [vmem:[%s6 + $0x28] sm:$0xff]
    %v1091 = vld [vmem:[%s6 + $0x30] sm:$0xff]
    %v1092 = vld [vmem:[%s6 + $0x38] sm:$0xff]
    %v1093 = vld [vmem:[%s6 + $0x40] sm:$0xff]
    %v1094 = vld [vmem:[%s6 + $0x48] sm:$0xff]
    %v1095 = vld [vmem:[%s6 + $0x50] sm:$0xff]
    %v1096 = vld [vmem:[%s6 + $0x58] sm:$0xff]
    %v1097 = vld [vmem:[%s6 + $0x60] sm:$0xff]
    %v1098 = vld [vmem:[%s6 + $0x68] sm:$0xff]
    %v1099 = vld [vmem:[%s6 + $0x70] sm:$0xff]
    %v1100 = vld [vmem:[%s6 + $0x78] sm:$0xff]
    %v1101 = vld [vmem:[%s6 + $0x80] sm:$0xff]
    %v1102 = vld [vmem:[%s6 + $0x88] sm:$0xff]
    %v1103 = vld [vmem:[%s6 + $0x90] sm:$0xff]
    %v1104 = vld [vmem:[%s6 + $0x98] sm:$0xff]
    %v1105 = vld [vmem:[%s6 + $0xa0] sm:$0xff]
    %v1106 = vld [vmem:[%s6 + $0xa8] sm:$0xff]
    %v1107 = vld [vmem:[%s6 + $0xb0] sm:$0xff]
    %v1108 = vld [vmem:[%s6 + $0xb8] sm:$0xff]
    %v1109 = vld [vmem:[%s6 + $0xc0] sm:$0xff]
    %v1110 = vld [vmem:[%s6 + $0xc8] sm:$0xff]
    %v1111 = vld [vmem:[%s6 + $0xd0] sm:$0xff]
    %v1112 = vld [vmem:[%s6 + $0xd8] sm:$0xff]
    %v1113 = vld [vmem:[%s6 + $0xe0] sm:$0xff]
    %v1114 = vld [vmem:[%s6 + $0xe8] sm:$0xff]
    %v1115 = vld [vmem:[%s6 + $0xf0] sm:$0xff]
    %v1116 = vld [vmem:[%s6 + $0xf8] sm:$0xff]
    %v1117 = vld [vmem:[%s6 + $0x100] sm:$0xff]
    %v1118 = vld [vmem:[%s6 + $0x108] sm:$0xff]
    %v1119 = vld [vmem:[%s6 + $0x110] sm:$0xff]
    %v1120 = vld [vmem:[%s6 + $0x118] sm:$0xff]
    %v1121 = vld [vmem:[%s6 + $0x120] sm:$0xff]
    %v1122 = vld [vmem:[%s6 + $0x128] sm:$0xff]
    %v1123 = vld [vmem:[%s6 + $0x130] sm:$0xff]
    %v1124 = vld [vmem:[%s6 + $0x138] sm:$0xff]
    %v1125 = vld [vmem:[%s6 + $0x140] sm:$0xff]
    %v1126 = vld [vmem:[%s6 + $0x148] sm:$0xff]
    %v1127 = vld [vmem:[%s6 + $0x150] sm:$0xff]
    %v1128 = vld [vmem:[%s6 + $0x158] sm:$0xff]
    %v1129 = vld [vmem:[%s6 + $0x160] sm:$0xff]
    %v1130 = vld [vmem:[%s6 + $0x168] sm:$0xff]
    %v1131 = vld [vmem:[%s6 + $0x170] sm:$0xff]
    %v1132 = vld [vmem:[%s6 + $0x178] sm:$0xff]
    %v1133 = vld [vmem:[%s7] sm:$0x3]
    %v1135 = vlaneseq
    %v1136 = vshrl.u32 %v1135, 7
    %v1137 = vsub.s32 0, %v1136
    %v1138 = vrot.slane %v1133, %v1137
    %v1139 = vlaneseq
    %v1140 = vshrl.u32 %v1139, 7
    %v1141 = vsub.s32 1, %v1140
    %v1142 = vrot.slane %v1133, %v1141
    %v1193 = vunpack.c.l.b16 %v1085
    %v1194 = vunpack.c.h.b16 %v1085
    %v1195 = vunpack.c.l.b16 %v1086
    %v1196 = vunpack.c.h.b16 %v1086
    %v1197 = vunpack.c.l.b16 %v1087
    %v1198 = vunpack.c.h.b16 %v1087
    %v1199 = vunpack.c.l.b16 %v1088
    %v1200 = vunpack.c.h.b16 %v1088
    %v1201 = vunpack.c.l.b16 %v1089
    %v1202 = vunpack.c.h.b16 %v1089
    %v1203 = vunpack.c.l.b16 %v1090
    %v1204 = vunpack.c.h.b16 %v1090
    %v1205 = vunpack.c.l.b16 %v1091
    %v1206 = vunpack.c.h.b16 %v1091
    %v1207 = vunpack.c.l.b16 %v1092
    %v1208 = vunpack.c.h.b16 %v1092
    %v1209 = vunpack.c.l.b16 %v1093
    %v1210 = vunpack.c.h.b16 %v1093
    %v1211 = vunpack.c.l.b16 %v1094
    %v1212 = vunpack.c.h.b16 %v1094
    %v1213 = vunpack.c.l.b16 %v1095
    %v1214 = vunpack.c.h.b16 %v1095
    %v1215 = vunpack.c.l.b16 %v1096
    %v1216 = vunpack.c.h.b16 %v1096
    %v1217 = vunpack.c.l.b16 %v1097
    %v1218 = vunpack.c.h.b16 %v1097
    %v1219 = vunpack.c.l.b16 %v1098
    %v1220 = vunpack.c.h.b16 %v1098
    %v1221 = vunpack.c.l.b16 %v1099
    %v1222 = vunpack.c.h.b16 %v1099
    %v1223 = vunpack.c.l.b16 %v1100
    %v1224 = vunpack.c.h.b16 %v1100
    %v1225 = vunpack.c.l.b16 %v1101
    %v1226 = vunpack.c.h.b16 %v1101
    %v1227 = vunpack.c.l.b16 %v1102
    %v1228 = vunpack.c.h.b16 %v1102
    %v1229 = vunpack.c.l.b16 %v1103
    %v1230 = vunpack.c.h.b16 %v1103
    %v1231 = vunpack.c.l.b16 %v1104
    %v1232 = vunpack.c.h.b16 %v1104
    %v1233 = vunpack.c.l.b16 %v1105
    %v1234 = vunpack.c.h.b16 %v1105
    %v1235 = vunpack.c.l.b16 %v1106
    %v1236 = vunpack.c.h.b16 %v1106
    %v1237 = vunpack.c.l.b16 %v1107
    %v1238 = vunpack.c.h.b16 %v1107
    %v1239 = vunpack.c.l.b16 %v1108
    %v1240 = vunpack.c.h.b16 %v1108
    %v1241 = vunpack.c.l.b16 %v1109
    %v1242 = vunpack.c.h.b16 %v1109
    %v1243 = vunpack.c.l.b16 %v1110
    %v1244 = vunpack.c.h.b16 %v1110
    %v1245 = vunpack.c.l.b16 %v1111
    %v1246 = vunpack.c.h.b16 %v1111
    %v1247 = vunpack.c.l.b16 %v1112
    %v1248 = vunpack.c.h.b16 %v1112
    %v1249 = vunpack.c.l.b16 %v1113
    %v1250 = vunpack.c.h.b16 %v1113
    %v1251 = vunpack.c.l.b16 %v1114
    %v1252 = vunpack.c.h.b16 %v1114
    %v1253 = vunpack.c.l.b16 %v1115
    %v1254 = vunpack.c.h.b16 %v1115
    %v1255 = vunpack.c.l.b16 %v1116
    %v1256 = vunpack.c.h.b16 %v1116
    %v1257 = vunpack.c.l.b16 %v1117
    %v1258 = vunpack.c.h.b16 %v1117
    %v1259 = vunpack.c.l.b16 %v1118
    %v1260 = vunpack.c.h.b16 %v1118
    %v1261 = vunpack.c.l.b16 %v1119
    %v1262 = vunpack.c.h.b16 %v1119
    %v1263 = vunpack.c.l.b16 %v1120
    %v1264 = vunpack.c.h.b16 %v1120
    %v1265 = vunpack.c.l.b16 %v1121
    %v1266 = vunpack.c.h.b16 %v1121
    %v1267 = vunpack.c.l.b16 %v1122
    %v1268 = vunpack.c.h.b16 %v1122
    %v1269 = vunpack.c.l.b16 %v1123
    %v1270 = vunpack.c.h.b16 %v1123
    %v1271 = vunpack.c.l.b16 %v1124
    %v1272 = vunpack.c.h.b16 %v1124
    %v1273 = vunpack.c.l.b16 %v1125
    %v1274 = vunpack.c.h.b16 %v1125
    %v1275 = vunpack.c.l.b16 %v1126
    %v1276 = vunpack.c.h.b16 %v1126
    %v1277 = vunpack.c.l.b16 %v1127
    %v1278 = vunpack.c.h.b16 %v1127
    %v1279 = vunpack.c.l.b16 %v1128
    %v1280 = vunpack.c.h.b16 %v1128
    %v1281 = vunpack.c.l.b16 %v1129
    %v1282 = vunpack.c.h.b16 %v1129
    %v1283 = vunpack.c.l.b16 %v1130
    %v1284 = vunpack.c.h.b16 %v1130
    %v1285 = vunpack.c.l.b16 %v1131
    %v1286 = vunpack.c.h.b16 %v1131
    %v1287 = vunpack.c.l.b16 %v1132
    %v1288 = vunpack.c.h.b16 %v1132
    %v1289 = vpack.c.b16 %v1195, %v1193
    %v1290 = vpack.c.b16 %v1196, %v1194
    %v1291 = vpack.c.b16 %v1199, %v1197
    %v1292 = vpack.c.b16 %v1200, %v1198
    %v1293 = vpack.c.b16 %v1203, %v1201
    %v1294 = vpack.c.b16 %v1204, %v1202
    %v1295 = vpack.c.b16 %v1207, %v1205
    %v1296 = vpack.c.b16 %v1208, %v1206
    %v1297 = vpack.c.b16 %v1211, %v1209
    %v1298 = vpack.c.b16 %v1212, %v1210
    %v1299 = vpack.c.b16 %v1215, %v1213
    %v1300 = vpack.c.b16 %v1216, %v1214
    %v1301 = vpack.c.b16 %v1219, %v1217
    %v1302 = vpack.c.b16 %v1220, %v1218
    %v1303 = vpack.c.b16 %v1223, %v1221
    %v1304 = vpack.c.b16 %v1224, %v1222
    %v1305 = vpack.c.b16 %v1227, %v1225
    %v1306 = vpack.c.b16 %v1228, %v1226
    %v1307 = vpack.c.b16 %v1231, %v1229
    %v1308 = vpack.c.b16 %v1232, %v1230
    %v1309 = vpack.c.b16 %v1235, %v1233
    %v1310 = vpack.c.b16 %v1236, %v1234
    %v1311 = vpack.c.b16 %v1239, %v1237
    %v1312 = vpack.c.b16 %v1240, %v1238
    %v1313 = vpack.c.b16 %v1243, %v1241
    %v1314 = vpack.c.b16 %v1244, %v1242
    %v1315 = vpack.c.b16 %v1247, %v1245
    %v1316 = vpack.c.b16 %v1248, %v1246
    %v1317 = vpack.c.b16 %v1251, %v1249
    %v1318 = vpack.c.b16 %v1252, %v1250
    %v1319 = vpack.c.b16 %v1255, %v1253
    %v1320 = vpack.c.b16 %v1256, %v1254
    %v1321 = vpack.c.b16 %v1259, %v1257
    %v1322 = vpack.c.b16 %v1260, %v1258
    %v1323 = vpack.c.b16 %v1263, %v1261
    %v1324 = vpack.c.b16 %v1264, %v1262
    %v1325 = vpack.c.b16 %v1267, %v1265
    %v1326 = vpack.c.b16 %v1268, %v1266
    %v1327 = vpack.c.b16 %v1271, %v1269
    %v1328 = vpack.c.b16 %v1272, %v1270
    %v1329 = vpack.c.b16 %v1275, %v1273
    %v1330 = vpack.c.b16 %v1276, %v1274
    %v1331 = vpack.c.b16 %v1279, %v1277
    %v1332 = vpack.c.b16 %v1280, %v1278
    %v1333 = vpack.c.b16 %v1283, %v1281
    %v1334 = vpack.c.b16 %v1284, %v1282
    %v1335 = vpack.c.b16 %v1287, %v1285
    %v1336 = vpack.c.b16 %v1288, %v1286
    %1385 = vmatprep.subr.bf16.mxu0 %v1290
    %1386 = vmatpush1.bf16.msra.mxu0 %v1289
    %1387 = vmatprep.subr.bf16.mxu0 %v1292
    %1388 = vmatpush1.bf16.msra.mxu0 %v1291
    %1389 = vmatprep.subr.bf16.mxu0 %v1294
    %1390 = vmatpush1.bf16.msra.mxu0 %v1293
    %1391 = vmatprep.subr.bf16.mxu0 %v1296
    %1392 = vmatpush1.bf16.msra.mxu0 %v1295
    %1393 = vmatprep.subr.bf16.mxu0 %v1298
    %1394 = vmatpush1.bf16.msra.mxu0 %v1297
    %1395 = vmatprep.subr.bf16.mxu0 %v1300
    %1396 = vmatpush1.bf16.msra.mxu0 %v1299
    %1397 = vmatprep.subr.bf16.mxu0 %v1302
    %1398 = vmatpush1.bf16.msra.mxu0 %v1301
    %1399 = vmatprep.subr.bf16.mxu0 %v1304
    %1400 = vmatpush1.bf16.msra.mxu0 %v1303
    %1401 = vmatprep.subr.bf16.mxu0 %v1306
    %1402 = vmatpush1.bf16.msra.mxu0 %v1305
    %1403 = vmatprep.subr.bf16.mxu0 %v1308
    %1404 = vmatpush1.bf16.msra.mxu0 %v1307
    %1405 = vmatprep.subr.bf16.mxu0 %v1310
    %1406 = vmatpush1.bf16.msra.mxu0 %v1309
    %1407 = vmatprep.subr.bf16.mxu0 %v1312
    %1408 = vmatpush1.bf16.msra.mxu0 %v1311
    %1409 = vmatprep.subr.bf16.mxu0 %v1314
    %1410 = vmatpush1.bf16.msra.mxu0 %v1313
    %1411 = vmatprep.subr.bf16.mxu0 %v1316
    %1412 = vmatpush1.bf16.msra.mxu0 %v1315
    %1413 = vmatprep.subr.bf16.mxu0 %v1318
    %1414 = vmatpush1.bf16.msra.mxu0 %v1317
    %1415 = vmatprep.subr.bf16.mxu0 %v1320
    %1416 = vmatpush1.bf16.msra.mxu0 %v1319
    %1417 = vmatprep.mubr.bf16.mxu0 %v1083
    %1418 = vmatmul.mubr.bf16.gmra.mrb[0].mxu0 %v1082
    %v1419 = vpop.f32.mrb[0].mxu0
    %v1420 = vadd.f32 %v1138, %v1419
    %v1421 = vpop.f32.mrb[0].mxu0
    %v1422 = vadd.f32 %v1142, %v1421
    %v1423 = vpop.f32.mrb[0].mxu0
    %v1424 = vadd.f32 %v1138, %v1423
    %v1425 = vpop.f32.mrb[0].mxu0
    %v1426 = vadd.f32 %v1142, %v1425
    %1427 = vdwg.mxu0
    %1428 = vmatprep.subr.bf16.mxu0 %v1322
    %1429 = vmatpush1.bf16.msra.mxu0 %v1321
    %1430 = vmatprep.subr.bf16.mxu0 %v1324
    %1431 = vmatpush1.bf16.msra.mxu0 %v1323
    %1432 = vmatprep.subr.bf16.mxu0 %v1326
    %1433 = vmatpush1.bf16.msra.mxu0 %v1325
    %1434 = vmatprep.subr.bf16.mxu0 %v1328
    %1435 = vmatpush1.bf16.msra.mxu0 %v1327
    %1436 = vmatprep.subr.bf16.mxu0 %v1330
    %1437 = vmatpush1.bf16.msra.mxu0 %v1329
    %1438 = vmatprep.subr.bf16.mxu0 %v1332
    %1439 = vmatpush1.bf16.msra.mxu0 %v1331
    %1440 = vmatprep.subr.bf16.mxu0 %v1334
    %1441 = vmatpush1.bf16.msra.mxu0 %v1333
    %1442 = vmatprep.subr.bf16.mxu0 %v1336
    %1443 = vmatpush1.bf16.msra.mxu0 %v1335
    %1444 = vmatprep.subr.bf16.mxu0 0
    %1445 = vmatpush1.bf16.msra.mxu0 0
    %1446 = vmatprep.subr.bf16.mxu0 0
    %1447 = vmatpush1.bf16.msra.mxu0 0
    %1448 = vmatprep.subr.bf16.mxu0 0
    %1449 = vmatpush1.bf16.msra.mxu0 0
    %1450 = vmatprep.subr.bf16.mxu0 0
    %1451 = vmatpush1.bf16.msra.mxu0 0
    %1452 = vmatprep.subr.bf16.mxu0 0
    %1453 = vmatpush1.bf16.msra.mxu0 0
    %1454 = vmatprep.subr.bf16.mxu0 0
    %1455 = vmatpush1.bf16.msra.mxu0 0
    %1456 = vmatprep.subr.bf16.mxu0 0
    %1457 = vmatpush1.bf16.msra.mxu0 0
    %1458 = vmatprep.subr.bf16.mxu0 0
    %1459 = vmatpush1.bf16.msra.mxu0 0
    %1460 = vmatprep.mubr.bf16.mxu0 0
    %1461 = vmatmul.mubr.bf16.gmra.mrb[0].mxu0 %v1084
    %v1462 = vpop.f32.mrb[0].mxu0
    %v1463 = vadd.f32 %v1420, %v1462
    %v1464 = vpop.f32.mrb[0].mxu0
    %v1465 = vadd.f32 %v1422, %v1464
    %v1466 = vpop.f32.mrb[0].mxu0
    %v1467 = vadd.f32 %v1424, %v1466
    %v1468 = vpop.f32.mrb[0].mxu0
    %v1469 = vadd.f32 %v1426, %v1468
    %1470 = vdwg.mxu0
    %v1471 = vmax.f32 %v1463, 0.0
    %v1472 = vmax.f32 %v1465, 0.0
    %v1473 = vmax.f32 %v1467, 0.0
    %v1474 = vmax.f32 %v1469, 0.0
    %1475 = vst.msk [vmem:[#allocation3] ss:$8 sm:$0x3] %vm477, 0.0
    %1476 = vst.msk [vmem:[#allocation3] ss:$8 sm:$0x0] %vm477, 0.0
    %v1481 = vrot.slane %v1471, 7
    %v1482 = vrot.slane %v1472, 7
    %v1483 = vrot.slane %v1473, 7
    %v1484 = vsel %vm56, %v1481, %v1483
    %v1485 = vrot.slane %v1474, 7
    %v1486 = vsel %vm56, %v1482, %v1485
    %1491 = vst [vmem:[#allocation3] sm:$0xfe] %v1481
    %1492 = vst [vmem:[#allocation3 + $0x8] sm:$0xfe] %v1482
    %1493 = vst [vmem:[#allocation3 + $0x30] sm:$0xff] %v1484
    %1494 = vst [vmem:[#allocation3 + $0x38] sm:$0xff] %v1486
    %1495 = vst [vmem:[#allocation3 + $0x10] sm:$0xff] %v1471
    %1496 = vst [vmem:[#allocation3 + $0x18] sm:$0xff] %v1472
    %1497 = vst [vmem:[#allocation3 + $0x40] sm:$0xff] %v1473
    %1498 = vst [vmem:[#allocation3 + $0x48] sm:$0xff] %v1474
    %v1499 = vrot.slane %v1471, 1
    %v1500 = vrot.slane %v1473, 1
    %v1501 = vsel %vm66, %v1499, %v1500
    %v1502 = vrot.slane %v1472, 1
    %v1503 = vrot.slane %v1474, 1
    %v1504 = vsel %vm66, %v1502, %v1503
    %1509 = vst [vmem:[#allocation3 + $0x20] sm:$0xff] %v1501
    %1510 = vst [vmem:[#allocation3 + $0x28] sm:$0xff] %v1504
    %1511 = vst [vmem:[#allocation3 + $0x50] sm:$0x7f] %v1500
    %1512 = vst [vmem:[#allocation3 + $0x58] sm:$0x7f] %v1503
    %1513 = vst.msk [vmem:[%s516] ss:$8 sm:$0x3] %vm477, 0.0
    %1514 = vst.msk [vmem:[%s516] ss:$8 sm:$0x0] %vm477, 0.0
    %v1515 = vld [vmem:[#allocation3] sm:$0xff]
    %v1516 = vld [vmem:[#allocation3 + $0x8] sm:$0xff]
    %v1517 = vld [vmem:[#allocation3 + $0x10] sm:$0xff]
    %v1518 = vld [vmem:[#allocation3 + $0x18] sm:$0xff]
    %v1519 = vld [vmem:[#allocation3 + $0x20] sm:$0xff]
    %v1520 = vld [vmem:[#allocation3 + $0x28] sm:$0xff]
    %v1521 = vld [vmem:[#allocation3 + $0x30] sm:$0xff]
    %v1522 = vld [vmem:[#allocation3 + $0x38] sm:$0xff]
    %v1523 = vld [vmem:[#allocation3 + $0x40] sm:$0xff]
    %v1524 = vld [vmem:[#allocation3 + $0x48] sm:$0xff]
    %v1525 = vld [vmem:[#allocation3 + $0x50] sm:$0xff]
    %v1526 = vld [vmem:[#allocation3 + $0x58] sm:$0xff]
    %v1527 = vpack.c.bf16 %v1521, %v1515
    %v1528 = vpack.c.bf16 %v1522, %v1516
    %v1529 = vpack.c.bf16 %v1523, %v1517
    %v1530 = vpack.c.bf16 %v1524, %v1518
    %v1531 = vpack.c.bf16 %v1525, %v1519
    %v1532 = vpack.c.bf16 %v1526, %v1520
    %v1533 = vld [vmem:[%s8] sm:$0xf]
    %v1534 = vld [vmem:[%s8 + $0x4] sm:$0xf]
    %v1535 = vld [vmem:[%s8 + $0x8] sm:$0xf]
    %v1536 = vld [vmem:[%s8 + $0xc] sm:$0xf]
    %v1537 = vld [vmem:[%s8 + $0x10] sm:$0xf]
    %v1538 = vld [vmem:[%s8 + $0x14] sm:$0xf]
    %v1539 = vld [vmem:[%s8 + $0x18] sm:$0xf]
    %v1540 = vld [vmem:[%s8 + $0x1c] sm:$0xf]
    %v1541 = vld [vmem:[%s8 + $0x20] sm:$0xf]
    %v1542 = vld [vmem:[%s8 + $0x24] sm:$0xf]
    %v1543 = vld [vmem:[%s8 + $0x28] sm:$0xf]
    %v1544 = vld [vmem:[%s8 + $0x2c] sm:$0xf]
    %v1545 = vld [vmem:[%s8 + $0x30] sm:$0xf]
    %v1546 = vld [vmem:[%s8 + $0x34] sm:$0xf]
    %v1547 = vld [vmem:[%s8 + $0x38] sm:$0xf]
    %v1548 = vld [vmem:[%s8 + $0x3c] sm:$0xf]
    %v1549 = vld [vmem:[%s8 + $0x40] sm:$0xf]
    %v1550 = vld [vmem:[%s8 + $0x44] sm:$0xf]
    %v1551 = vld [vmem:[%s8 + $0x48] sm:$0xf]
    %v1552 = vld [vmem:[%s8 + $0x4c] sm:$0xf]
    %v1553 = vld [vmem:[%s8 + $0x50] sm:$0xf]
    %v1554 = vld [vmem:[%s8 + $0x54] sm:$0xf]
    %v1555 = vld [vmem:[%s8 + $0x58] sm:$0xf]
    %v1556 = vld [vmem:[%s8 + $0x5c] sm:$0xf]
    %v1557 = vld [vmem:[%s8 + $0x60] sm:$0xf]
    %v1558 = vld [vmem:[%s8 + $0x64] sm:$0xf]
    %v1559 = vld [vmem:[%s8 + $0x68] sm:$0xf]
    %v1560 = vld [vmem:[%s8 + $0x6c] sm:$0xf]
    %v1561 = vld [vmem:[%s8 + $0x70] sm:$0xf]
    %v1562 = vld [vmem:[%s8 + $0x74] sm:$0xf]
    %v1563 = vld [vmem:[%s8 + $0x78] sm:$0xf]
    %v1564 = vld [vmem:[%s8 + $0x7c] sm:$0xf]
    %v1565 = vld [vmem:[%s8 + $0x80] sm:$0xf]
    %v1566 = vld [vmem:[%s8 + $0x84] sm:$0xf]
    %v1567 = vld [vmem:[%s8 + $0x88] sm:$0xf]
    %v1568 = vld [vmem:[%s8 + $0x8c] sm:$0xf]
    %v1569 = vld [vmem:[%s8 + $0x90] sm:$0xf]
    %v1570 = vld [vmem:[%s8 + $0x94] sm:$0xf]
    %v1571 = vld [vmem:[%s8 + $0x98] sm:$0xf]
    %v1572 = vld [vmem:[%s8 + $0x9c] sm:$0xf]
    %v1573 = vld [vmem:[%s8 + $0xa0] sm:$0xf]
    %v1574 = vld [vmem:[%s8 + $0xa4] sm:$0xf]
    %v1575 = vld [vmem:[%s8 + $0xa8] sm:$0xf]
    %v1576 = vld [vmem:[%s8 + $0xac] sm:$0xf]
    %v1577 = vld [vmem:[%s8 + $0xb0] sm:$0xf]
    %v1578 = vld [vmem:[%s8 + $0xb4] sm:$0xf]
    %v1579 = vld [vmem:[%s8 + $0xb8] sm:$0xf]
    %v1580 = vld [vmem:[%s8 + $0xbc] sm:$0xf]
    %v1581 = vld [vmem:[%s8 + $0xc0] sm:$0xf]
    %v1582 = vld [vmem:[%s8 + $0xc4] sm:$0xf]
    %v1583 = vld [vmem:[%s8 + $0xc8] sm:$0xf]
    %v1584 = vld [vmem:[%s8 + $0xcc] sm:$0xf]
    %v1585 = vld [vmem:[%s8 + $0xd0] sm:$0xf]
    %v1586 = vld [vmem:[%s8 + $0xd4] sm:$0xf]
    %v1587 = vld [vmem:[%s8 + $0xd8] sm:$0xf]
    %v1588 = vld [vmem:[%s8 + $0xdc] sm:$0xf]
    %v1589 = vld [vmem:[%s8 + $0xe0] sm:$0xf]
    %v1590 = vld [vmem:[%s8 + $0xe4] sm:$0xf]
    %v1591 = vld [vmem:[%s8 + $0xe8] sm:$0xf]
    %v1592 = vld [vmem:[%s8 + $0xec] sm:$0xf]
    %v1593 = vld [vmem:[%s8 + $0xf0] sm:$0xf]
    %v1594 = vld [vmem:[%s8 + $0xf4] sm:$0xf]
    %v1595 = vld [vmem:[%s8 + $0xf8] sm:$0xf]
    %v1596 = vld [vmem:[%s8 + $0xfc] sm:$0xf]
    %v1597 = vld [vmem:[%s8 + $0x100] sm:$0xf]
    %v1598 = vld [vmem:[%s8 + $0x104] sm:$0xf]
    %v1599 = vld [vmem:[%s8 + $0x108] sm:$0xf]
    %v1600 = vld [vmem:[%s8 + $0x10c] sm:$0xf]
    %v1601 = vld [vmem:[%s8 + $0x110] sm:$0xf]
    %v1602 = vld [vmem:[%s8 + $0x114] sm:$0xf]
    %v1603 = vld [vmem:[%s8 + $0x118] sm:$0xf]
    %v1604 = vld [vmem:[%s8 + $0x11c] sm:$0xf]
    %v1605 = vld [vmem:[%s8 + $0x120] sm:$0xf]
    %v1606 = vld [vmem:[%s8 + $0x124] sm:$0xf]
    %v1607 = vld [vmem:[%s8 + $0x128] sm:$0xf]
    %v1608 = vld [vmem:[%s8 + $0x12c] sm:$0xf]
    %v1609 = vld [vmem:[%s8 + $0x130] sm:$0xf]
    %v1610 = vld [vmem:[%s8 + $0x134] sm:$0xf]
    %v1611 = vld [vmem:[%s8 + $0x138] sm:$0xf]
    %v1612 = vld [vmem:[%s8 + $0x13c] sm:$0xf]
    %v1613 = vld [vmem:[%s8 + $0x140] sm:$0xf]
    %v1614 = vld [vmem:[%s8 + $0x144] sm:$0xf]
    %v1615 = vld [vmem:[%s8 + $0x148] sm:$0xf]
    %v1616 = vld [vmem:[%s8 + $0x14c] sm:$0xf]
    %v1617 = vld [vmem:[%s8 + $0x150] sm:$0xf]
    %v1618 = vld [vmem:[%s8 + $0x154] sm:$0xf]
    %v1619 = vld [vmem:[%s8 + $0x158] sm:$0xf]
    %v1620 = vld [vmem:[%s8 + $0x15c] sm:$0xf]
    %v1621 = vld [vmem:[%s8 + $0x160] sm:$0xf]
    %v1622 = vld [vmem:[%s8 + $0x164] sm:$0xf]
    %v1623 = vld [vmem:[%s8 + $0x168] sm:$0xf]
    %v1624 = vld [vmem:[%s8 + $0x16c] sm:$0xf]
    %v1625 = vld [vmem:[%s8 + $0x170] sm:$0xf]
    %v1626 = vld [vmem:[%s8 + $0x174] sm:$0xf]
    %v1627 = vld [vmem:[%s8 + $0x178] sm:$0xf]
    %v1628 = vld [vmem:[%s8 + $0x17c] sm:$0xf]
    %v1629 = vld [vmem:[%s9] sm:$0x1]
    %v1631 = vlaneseq
    %v1632 = vshrl.u32 %v1631, 7
    %v1633 = vsub.s32 0, %v1632
    %v1634 = vrot.slane %v1629, %v1633
    %v1732 = vunpack.c.l.b16 %v1533
    %v1733 = vunpack.c.l.b16 %v1534
    %v1734 = vunpack.c.l.b16 %v1535
    %v1735 = vunpack.c.l.b16 %v1536
    %v1736 = vunpack.c.l.b16 %v1537
    %v1737 = vunpack.c.l.b16 %v1538
    %v1738 = vunpack.c.l.b16 %v1539
    %v1739 = vunpack.c.l.b16 %v1540
    %v1740 = vunpack.c.l.b16 %v1541
    %v1741 = vunpack.c.l.b16 %v1542
    %v1742 = vunpack.c.l.b16 %v1543
    %v1743 = vunpack.c.l.b16 %v1544
    %v1744 = vunpack.c.l.b16 %v1545
    %v1745 = vunpack.c.l.b16 %v1546
    %v1746 = vunpack.c.l.b16 %v1547
    %v1747 = vunpack.c.l.b16 %v1548
    %v1748 = vunpack.c.l.b16 %v1549
    %v1749 = vunpack.c.l.b16 %v1550
    %v1750 = vunpack.c.l.b16 %v1551
    %v1751 = vunpack.c.l.b16 %v1552
    %v1752 = vunpack.c.l.b16 %v1553
    %v1753 = vunpack.c.l.b16 %v1554
    %v1754 = vunpack.c.l.b16 %v1555
    %v1755 = vunpack.c.l.b16 %v1556
    %v1756 = vunpack.c.l.b16 %v1557
    %v1757 = vunpack.c.l.b16 %v1558
    %v1758 = vunpack.c.l.b16 %v1559
    %v1759 = vunpack.c.l.b16 %v1560
    %v1760 = vunpack.c.l.b16 %v1561
    %v1761 = vunpack.c.l.b16 %v1562
    %v1762 = vunpack.c.l.b16 %v1563
    %v1763 = vunpack.c.l.b16 %v1564
    %v1764 = vunpack.c.l.b16 %v1565
    %v1765 = vunpack.c.l.b16 %v1566
    %v1766 = vunpack.c.l.b16 %v1567
    %v1767 = vunpack.c.l.b16 %v1568
    %v1768 = vunpack.c.l.b16 %v1569
    %v1769 = vunpack.c.l.b16 %v1570
    %v1770 = vunpack.c.l.b16 %v1571
    %v1771 = vunpack.c.l.b16 %v1572
    %v1772 = vunpack.c.l.b16 %v1573
    %v1773 = vunpack.c.l.b16 %v1574
    %v1774 = vunpack.c.l.b16 %v1575
    %v1775 = vunpack.c.l.b16 %v1576
    %v1776 = vunpack.c.l.b16 %v1577
    %v1777 = vunpack.c.l.b16 %v1578
    %v1778 = vunpack.c.l.b16 %v1579
    %v1779 = vunpack.c.l.b16 %v1580
    %v1780 = vunpack.c.l.b16 %v1581
    %v1781 = vunpack.c.l.b16 %v1582
    %v1782 = vunpack.c.l.b16 %v1583
    %v1783 = vunpack.c.l.b16 %v1584
    %v1784 = vunpack.c.l.b16 %v1585
    %v1785 = vunpack.c.l.b16 %v1586
    %v1786 = vunpack.c.l.b16 %v1587
    %v1787 = vunpack.c.l.b16 %v1588
    %v1788 = vunpack.c.l.b16 %v1589
    %v1789 = vunpack.c.l.b16 %v1590
    %v1790 = vunpack.c.l.b16 %v1591
    %v1791 = vunpack.c.l.b16 %v1592
    %v1792 = vunpack.c.l.b16 %v1593
    %v1793 = vunpack.c.l.b16 %v1594
    %v1794 = vunpack.c.l.b16 %v1595
    %v1795 = vunpack.c.l.b16 %v1596
    %v1796 = vunpack.c.l.b16 %v1597
    %v1797 = vunpack.c.l.b16 %v1598
    %v1798 = vunpack.c.l.b16 %v1599
    %v1799 = vunpack.c.l.b16 %v1600
    %v1800 = vunpack.c.l.b16 %v1601
    %v1801 = vunpack.c.l.b16 %v1602
    %v1802 = vunpack.c.l.b16 %v1603
    %v1803 = vunpack.c.l.b16 %v1604
    %v1804 = vunpack.c.l.b16 %v1605
    %v1805 = vunpack.c.l.b16 %v1606
    %v1806 = vunpack.c.l.b16 %v1607
    %v1807 = vunpack.c.l.b16 %v1608
    %v1808 = vunpack.c.l.b16 %v1609
    %v1809 = vunpack.c.l.b16 %v1610
    %v1810 = vunpack.c.l.b16 %v1611
    %v1811 = vunpack.c.l.b16 %v1612
    %v1812 = vunpack.c.l.b16 %v1613
    %v1813 = vunpack.c.l.b16 %v1614
    %v1814 = vunpack.c.l.b16 %v1615
    %v1815 = vunpack.c.l.b16 %v1616
    %v1816 = vunpack.c.l.b16 %v1617
    %v1817 = vunpack.c.l.b16 %v1618
    %v1818 = vunpack.c.l.b16 %v1619
    %v1819 = vunpack.c.l.b16 %v1620
    %v1820 = vunpack.c.l.b16 %v1621
    %v1821 = vunpack.c.l.b16 %v1622
    %v1822 = vunpack.c.l.b16 %v1623
    %v1823 = vunpack.c.l.b16 %v1624
    %v1824 = vunpack.c.l.b16 %v1625
    %v1825 = vunpack.c.l.b16 %v1626
    %v1826 = vunpack.c.l.b16 %v1627
    %v1827 = vunpack.c.l.b16 %v1628
    %v1828 = vpack.c.b16 %v1733, %v1732
    %v1829 = vpack.c.b16 %v1735, %v1734
    %v1830 = vpack.c.b16 %v1737, %v1736
    %v1831 = vpack.c.b16 %v1739, %v1738
    %v1832 = vpack.c.b16 %v1741, %v1740
    %v1833 = vpack.c.b16 %v1743, %v1742
    %v1834 = vpack.c.b16 %v1745, %v1744
    %v1835 = vpack.c.b16 %v1747, %v1746
    %v1836 = vpack.c.b16 %v1749, %v1748
    %v1837 = vpack.c.b16 %v1751, %v1750
    %v1838 = vpack.c.b16 %v1753, %v1752
    %v1839 = vpack.c.b16 %v1755, %v1754
    %v1840 = vpack.c.b16 %v1757, %v1756
    %v1841 = vpack.c.b16 %v1759, %v1758
    %v1842 = vpack.c.b16 %v1761, %v1760
    %v1843 = vpack.c.b16 %v1763, %v1762
    %v1844 = vpack.c.b16 %v1765, %v1764
    %v1845 = vpack.c.b16 %v1767, %v1766
    %v1846 = vpack.c.b16 %v1769, %v1768
    %v1847 = vpack.c.b16 %v1771, %v1770
    %v1848 = vpack.c.b16 %v1773, %v1772
    %v1849 = vpack.c.b16 %v1775, %v1774
    %v1850 = vpack.c.b16 %v1777, %v1776
    %v1851 = vpack.c.b16 %v1779, %v1778
    %v1852 = vpack.c.b16 %v1781, %v1780
    %v1853 = vpack.c.b16 %v1783, %v1782
    %v1854 = vpack.c.b16 %v1785, %v1784
    %v1855 = vpack.c.b16 %v1787, %v1786
    %v1856 = vpack.c.b16 %v1789, %v1788
    %v1857 = vpack.c.b16 %v1791, %v1790
    %v1858 = vpack.c.b16 %v1793, %v1792
    %v1859 = vpack.c.b16 %v1795, %v1794
    %v1860 = vpack.c.b16 %v1797, %v1796
    %v1861 = vpack.c.b16 %v1799, %v1798
    %v1862 = vpack.c.b16 %v1801, %v1800
    %v1863 = vpack.c.b16 %v1803, %v1802
    %v1864 = vpack.c.b16 %v1805, %v1804
    %v1865 = vpack.c.b16 %v1807, %v1806
    %v1866 = vpack.c.b16 %v1809, %v1808
    %v1867 = vpack.c.b16 %v1811, %v1810
    %v1868 = vpack.c.b16 %v1813, %v1812
    %v1869 = vpack.c.b16 %v1815, %v1814
    %v1870 = vpack.c.b16 %v1817, %v1816
    %v1871 = vpack.c.b16 %v1819, %v1818
    %v1872 = vpack.c.b16 %v1821, %v1820
    %v1873 = vpack.c.b16 %v1823, %v1822
    %v1874 = vpack.c.b16 %v1825, %v1824
    %v1875 = vpack.c.b16 %v1827, %v1826
    %1924 = vmatprep.subr.bf16.mxu0 0
    %1925 = vmatpush1.bf16.msra.mxu0 %v1828
    %1926 = vmatprep.subr.bf16.mxu0 0
    %1927 = vmatpush1.bf16.msra.mxu0 %v1829
    %1928 = vmatprep.subr.bf16.mxu0 0
    %1929 = vmatpush1.bf16.msra.mxu0 %v1830
    %1930 = vmatprep.subr.bf16.mxu0 0
    %1931 = vmatpush1.bf16.msra.mxu0 %v1831
    %1932 = vmatprep.subr.bf16.mxu0 0
    %1933 = vmatpush1.bf16.msra.mxu0 %v1832
    %1934 = vmatprep.subr.bf16.mxu0 0
    %1935 = vmatpush1.bf16.msra.mxu0 %v1833
    %1936 = vmatprep.subr.bf16.mxu0 0
    %1937 = vmatpush1.bf16.msra.mxu0 %v1834
    %1938 = vmatprep.subr.bf16.mxu0 0
    %1939 = vmatpush1.bf16.msra.mxu0 %v1835
    %1940 = vmatprep.subr.bf16.mxu0 0
    %1941 = vmatpush1.bf16.msra.mxu0 %v1836
    %1942 = vmatprep.subr.bf16.mxu0 0
    %1943 = vmatpush1.bf16.msra.mxu0 %v1837
    %1944 = vmatprep.subr.bf16.mxu0 0
    %1945 = vmatpush1.bf16.msra.mxu0 %v1838
    %1946 = vmatprep.subr.bf16.mxu0 0
    %1947 = vmatpush1.bf16.msra.mxu0 %v1839
    %1948 = vmatprep.subr.bf16.mxu0 0
    %1949 = vmatpush1.bf16.msra.mxu0 %v1840
    %1950 = vmatprep.subr.bf16.mxu0 0
    %1951 = vmatpush1.bf16.msra.mxu0 %v1841
    %1952 = vmatprep.subr.bf16.mxu0 0
    %1953 = vmatpush1.bf16.msra.mxu0 %v1842
    %1954 = vmatprep.subr.bf16.mxu0 0
    %1955 = vmatpush1.bf16.msra.mxu0 %v1843
    %1956 = vmatprep.mubr.bf16.mxu0 %v1528
    %1957 = vmatmul.mubr.bf16.gmra.mrb[0].mxu0 %v1527
    %v1958 = vpop.f32.mrb[0].mxu0
    %v1959 = vadd.f32 %v1634, %v1958
    %v1960 = vpop.f32.mrb[0].mxu0
    %v1961 = vpop.f32.mrb[0].mxu0
    %v1962 = vadd.f32 %v1634, %v1961
    %v1963 = vpop.f32.mrb[0].mxu0
    %1964 = vdwg.mxu0
    %1965 = vmatprep.subr.bf16.mxu0 0
    %1966 = vmatpush1.bf16.msra.mxu0 %v1844
    %1967 = vmatprep.subr.bf16.mxu0 0
    %1968 = vmatpush1.bf16.msra.mxu0 %v1845
    %1969 = vmatprep.subr.bf16.mxu0 0
    %1970 = vmatpush1.bf16.msra.mxu0 %v1846
    %1971 = vmatprep.subr.bf16.mxu0 0
    %1972 = vmatpush1.bf16.msra.mxu0 %v1847
    %1973 = vmatprep.subr.bf16.mxu0 0
    %1974 = vmatpush1.bf16.msra.mxu0 %v1848
    %1975 = vmatprep.subr.bf16.mxu0 0
    %1976 = vmatpush1.bf16.msra.mxu0 %v1849
    %1977 = vmatprep.subr.bf16.mxu0 0
    %1978 = vmatpush1.bf16.msra.mxu0 %v1850
    %1979 = vmatprep.subr.bf16.mxu0 0
    %1980 = vmatpush1.bf16.msra.mxu0 %v1851
    %1981 = vmatprep.subr.bf16.mxu0 0
    %1982 = vmatpush1.bf16.msra.mxu0 %v1852
    %1983 = vmatprep.subr.bf16.mxu0 0
    %1984 = vmatpush1.bf16.msra.mxu0 %v1853
    %1985 = vmatprep.subr.bf16.mxu0 0
    %1986 = vmatpush1.bf16.msra.mxu0 %v1854
    %1987 = vmatprep.subr.bf16.mxu0 0
    %1988 = vmatpush1.bf16.msra.mxu0 %v1855
    %1989 = vmatprep.subr.bf16.mxu0 0
    %1990 = vmatpush1.bf16.msra.mxu0 %v1856
    %1991 = vmatprep.subr.bf16.mxu0 0
    %1992 = vmatpush1.bf16.msra.mxu0 %v1857
    %1993 = vmatprep.subr.bf16.mxu0 0
    %1994 = vmatpush1.bf16.msra.mxu0 %v1858
    %1995 = vmatprep.subr.bf16.mxu0 0
    %1996 = vmatpush1.bf16.msra.mxu0 %v1859
    %1997 = vmatprep.mubr.bf16.mxu0 %v1530
    %1998 = vmatmul.mubr.bf16.gmra.mrb[0].mxu0 %v1529
    %v1999 = vpop.f32.mrb[0].mxu0
    %v2000 = vadd.f32 %v1959, %v1999
    %v2001 = vpop.f32.mrb[0].mxu0
    %v2002 = vpop.f32.mrb[0].mxu0
    %v2003 = vadd.f32 %v1962, %v2002
    %v2004 = vpop.f32.mrb[0].mxu0
    %2005 = vdwg.mxu0
    %2006 = vmatprep.subr.bf16.mxu0 0
    %2007 = vmatpush1.bf16.msra.mxu0 %v1860
    %2008 = vmatprep.subr.bf16.mxu0 0
    %2009 = vmatpush1.bf16.msra.mxu0 %v1861
    %2010 = vmatprep.subr.bf16.mxu0 0
    %2011 = vmatpush1.bf16.msra.mxu0 %v1862
    %2012 = vmatprep.subr.bf16.mxu0 0
    %2013 = vmatpush1.bf16.msra.mxu0 %v1863
    %2014 = vmatprep.subr.bf16.mxu0 0
    %2015 = vmatpush1.bf16.msra.mxu0 %v1864
    %2016 = vmatprep.subr.bf16.mxu0 0
    %2017 = vmatpush1.bf16.msra.mxu0 %v1865
    %2018 = vmatprep.subr.bf16.mxu0 0
    %2019 = vmatpush1.bf16.msra.mxu0 %v1866
    %2020 = vmatprep.subr.bf16.mxu0 0
    %2021 = vmatpush1.bf16.msra.mxu0 %v1867
    %2022 = vmatprep.subr.bf16.mxu0 0
    %2023 = vmatpush1.bf16.msra.mxu0 %v1868
    %2024 = vmatprep.subr.bf16.mxu0 0
    %2025 = vmatpush1.bf16.msra.mxu0 %v1869
    %2026 = vmatprep.subr.bf16.mxu0 0
    %2027 = vmatpush1.bf16.msra.mxu0 %v1870
    %2028 = vmatprep.subr.bf16.mxu0 0
    %2029 = vmatpush1.bf16.msra.mxu0 %v1871
    %2030 = vmatprep.subr.bf16.mxu0 0
    %2031 = vmatpush1.bf16.msra.mxu0 %v1872
    %2032 = vmatprep.subr.bf16.mxu0 0
    %2033 = vmatpush1.bf16.msra.mxu0 %v1873
    %2034 = vmatprep.subr.bf16.mxu0 0
    %2035 = vmatpush1.bf16.msra.mxu0 %v1874
    %2036 = vmatprep.subr.bf16.mxu0 0
    %2037 = vmatpush1.bf16.msra.mxu0 %v1875
    %2038 = vmatprep.mubr.bf16.mxu0 %v1532
    %2039 = vmatmul.mubr.bf16.gmra.mrb[0].mxu0 %v1531
    %v2040 = vpop.f32.mrb[0].mxu0
    %v2041 = vadd.f32 %v2000, %v2040
    %v2042 = vpop.f32.mrb[0].mxu0
    %v2043 = vpop.f32.mrb[0].mxu0
    %v2044 = vadd.f32 %v2003, %v2043
    %v2045 = vpop.f32.mrb[0].mxu0
    %2046 = vdwg.mxu0
    %v2047 = vstv %s52
    %v2048 = vmul.f32 %v2047, %v2041
    %v2049 = vmul.f32 %v2047, %v2044
    %v2050 = vsub.f32 %v1054, %v2048
    %v2051 = vsub.f32 %v1055, %v2049
    %2052 = vst [vmem:[%s10] sm:$0xff] %v2050
    %2053 = vst [vmem:[%s10 + $0x8] sm:$0xff] %v2051
    // Predicated region
    $region46: #{rediffusion_forward.1} parent=1 // pred_check
      _
    $region47: #{rediffusion_forward.1} parent=1 // pred_check_branch
      %2055 = sbr.rel (0) target = $region49
    $region48: #{rediffusion_forward.1} parent=1 // pred_region
      _
    $region49: #{rediffusion_forward.1} parent=1 // pred_fallthru
      _
    // Predicated region
    $region50: #{rediffusion_forward.1} parent=1 // pred_check
      _
    $region51: #{rediffusion_forward.1} parent=1 // pred_check_branch
      %2057 = sbr.rel (0) target = $region53
    $region52: #{rediffusion_forward.1} parent=1 // pred_region
      _
    $region53: #{rediffusion_forward.1} parent=1 // pred_fallthru
      _
    %2058 = vsyncpa [#allocation5], 1

</llo_original>
